<compile_context>
chip_gen: v7x
topology: tpu7x:2x2x1
jax: 0.10.0
libtpu: 0.0.40
codegen_flags: <defaults>
</compile_context>

<pallas_src>
import functools

import numpy as np
import jax
import jax.numpy as jnp
from jax.experimental import pallas as pl
from jax.experimental.pallas import tpu as pltpu


# ----------------------------------------------------------------------------
# Glue: window partition / reverse (row-major, identical to torch view/permute)
# ----------------------------------------------------------------------------
def window_partition(x, ws):
    B, H, W, C = x.shape
    x = x.reshape(B, H // ws, ws, W // ws, ws, C)
    return x.transpose(0, 1, 3, 2, 4, 5).reshape(-1, ws, ws, C)


def window_reverse(windows, ws, H, W):
    B = windows.shape[0] // ((H // ws) * (W // ws))
    x = windows.reshape(B, H // ws, W // ws, ws, ws, -1)
    return x.transpose(0, 1, 3, 2, 4, 5).reshape(B, H, W, -1)


def window_partition_np(x, ws):
    B, H, W, C = x.shape
    x = x.reshape(B, H // ws, ws, W // ws, ws, C)
    return np.transpose(x, (0, 1, 3, 2, 4, 5)).reshape(-1, ws, ws, C)


def relative_position_index_np(ws):
    coords = np.stack(np.meshgrid(np.arange(ws), np.arange(ws), indexing="ij"))
    coords_flat = coords.reshape(2, -1)                       # (2, N)
    rel = coords_flat[:, :, None] - coords_flat[:, None, :]   # (2, N, N)
    rel = rel.transpose(1, 2, 0).astype(np.int64)
    rel[:, :, 0] += ws - 1
    rel[:, :, 1] += ws - 1
    rel[:, :, 0] *= 2 * ws - 1
    return rel.sum(-1)                                        # (N, N)


def calculate_mask_np(H, W, ws, shift):
    img_mask = np.zeros((1, H, W, 1), dtype=np.float32)
    slices = (slice(0, -ws), slice(-ws, -shift), slice(-shift, None))
    cnt = 0
    for hs in slices:
        for wsl in slices:
            img_mask[:, hs, wsl, :] = cnt
            cnt += 1
    mw = window_partition_np(img_mask, ws).reshape(-1, ws * ws)   # (nW, N)
    am = mw[:, None, :] - mw[:, :, None]                          # (nW, N, N)
    return np.where(am != 0, -100.0, 0.0).astype(np.float32)


# ----------------------------------------------------------------------------
# Kernel 1: fused norm1 + window multi-head self-attention
#   grid = (B, num_heads); heads handled by weight BlockSpecs + output
#   accumulation -> no in-kernel head relayout (no slices/concats/transposes
#   of activations beyond two cheap 32-lane q/k/v column slices).
# ----------------------------------------------------------------------------
def _attn_kernel(x_ref, g1_ref, b1_ref, w3_ref, b3_ref, bm_ref, wp_ref, bp_ref,
                 o_ref, xn_ref, *, num_windows, window_tokens, head_dim):
    nW, N, hd = num_windows, window_tokens, head_dim
    h = pl.program_id(1)

    @pl.when(h == 0)
    def _():
        # LayerNorm(norm1) once per image; cache bf16 for the MXU matmuls.
        x = x_ref[...]                                          # (nW, N, C) f32
        mu = jnp.mean(x, axis=-1, keepdims=True)
        var = jnp.mean(jnp.square(x - mu), axis=-1, keepdims=True)
        xn = (x - mu) * jax.lax.rsqrt(var + 1e-5)
        xn = xn * g1_ref[...] + b1_ref[...]
        xn_ref[...] = xn.reshape(nW * N, -1).astype(xn_ref.dtype)
        # output block is resident across the head axis: init with proj bias
        o_ref[...] = jnp.broadcast_to(bp_ref[...], o_ref.shape).astype(o_ref.dtype)

    xnf = xn_ref[...]                                           # (nW*N, C) bf16
    # per-head [Wq|Wk|Wv] (qk scale pre-folded into the Q columns in the wrapper)
    qkv = jnp.dot(xnf, w3_ref[0], preferred_element_type=jnp.float32) + b3_ref[0]
    q = qkv[:, :hd].reshape(nW, N, hd).astype(jnp.bfloat16)
    k = qkv[:, hd:2 * hd].reshape(nW, N, hd).astype(jnp.bfloat16)
    v = qkv[:, 2 * hd:].reshape(nW, N, hd).astype(jnp.bfloat16)

    s = jnp.einsum("wnd,wmd->wnm", q, k,
                   preferred_element_type=jnp.float32)          # (nW, N, N)
    s = s + bm_ref[0]            # rel-pos bias (+ shift mask), f32, per head
    # open-coded softmax: divide moved to EUP via approx reciprocal
    s = s - jnp.max(s, axis=-1, keepdims=True)
    e = jnp.exp(s)
    p = e * pl.reciprocal(jnp.sum(e, axis=-1, keepdims=True), approx=True)

    o = jnp.einsum("wnm,wmd->wnd", p.astype(jnp.bfloat16), v,
                   preferred_element_type=jnp.float32)          # (nW, N, hd)

    # head-merge == accumulate the per-head slice of the output projection
    part = jnp.dot(o.reshape(nW * N, hd).astype(jnp.bfloat16), wp_ref[0],
                   preferred_element_type=jnp.float32)          # (nW*N, C)
    o_ref[...] += part.astype(o_ref.dtype)


def window_attention_pallas(xw, g1, b1, w3_heads, b3_heads, bias_mask,
                            wproj_heads, bproj, num_heads, nW):
    B_, N, C = xw.shape                 # B_ = B * nW
    B = B_ // nW
    hd = C // num_heads
    r_img = nW * N                      # rows per image (all windows)
    nWb = bias_mask.shape[1]            # nW (shifted) or 1 (no shift)

    kern = functools.partial(_attn_kernel, num_windows=nW,
                             window_tokens=N, head_dim=hd)
    # NOTE(v7x): at real Swin widths, add pipeline_mode=pl.Buffered(1) on the
    # constant-index weight/bias streams and set vmem_limit_bytes so single-
    # buffered weights fit the 64 MiB VMEM; unnecessary at demo scale.
    out = pl.pallas_call(
        kern,
        out_shape=jax.ShapeDtypeStruct((B * r_img, C), jnp.float32),
        grid=(B, num_heads),
        in_specs=[
            pl.BlockSpec((nW, N, C), lambda b, h: (b, 0, 0)),         # windows of image b
            pl.BlockSpec((1, C), lambda b, h: (0, 0)),                # norm1 gamma
            pl.BlockSpec((1, C), lambda b, h: (0, 0)),                # norm1 beta
            pl.BlockSpec((1, C, 3 * hd), lambda b, h: (h, 0, 0)),     # per-head Wq|Wk|Wv (bf16)
            pl.BlockSpec((1, 1, 3 * hd), lambda b, h: (h, 0, 0)),     # per-head qkv bias
            pl.BlockSpec((1, nWb, N, N), lambda b, h: (h, 0, 0, 0)),  # rel-pos bias (+mask)
            pl.BlockSpec((1, hd, C), lambda b, h: (h, 0, 0)),         # per-head proj rows (bf16)
            pl.BlockSpec((1, C), lambda b, h: (0, 0)),                # proj bias
        ],
        out_specs=pl.BlockSpec((r_img, C), lambda b, h: (b, 0)),      # resident across h
        scratch_shapes=[pltpu.VMEM((r_img, C), jnp.bfloat16)],        # cached LN(x)
        compiler_params=pltpu.CompilerParams(
            dimension_semantics=("parallel", "arbitrary")),
    )(xw, g1, b1, w3_heads, b3_heads, bias_mask, wproj_heads, bproj)
    return out.reshape(B_, N, C)


# ----------------------------------------------------------------------------
# Kernel 2: fused residual#1 + norm2 + MLP (fc1 -> GELU -> fc2) + residual#2
# ----------------------------------------------------------------------------
def _mlp_kernel(s_ref, a_ref, g2_ref, be2_ref, w1_ref, bb1_ref, w2_ref,
                bb2_ref, o_ref):
    x = s_ref[...] + a_ref[...]                      # residual #1, fused
    mu = jnp.mean(x, axis=-1, keepdims=True)
    var = jnp.mean(jnp.square(x - mu), axis=-1, keepdims=True)
    xn = (x - mu) * jax.lax.rsqrt(var + 1e-5)
    xn = xn * g2_ref[...] + be2_ref[...]
    h = jnp.dot(xn.astype(jnp.bfloat16), w1_ref[...],
                preferred_element_type=jnp.float32) + bb1_ref[...]
    h = jax.nn.gelu(h, approximate=False)            # exact GELU (nn.GELU default)
    y = jnp.dot(h.astype(jnp.bfloat16), w2_ref[...],
                preferred_element_type=jnp.float32) + bb2_ref[...]
    o_ref[...] = (x + y).astype(o_ref.dtype)         # residual #2


def _pick_row_tile(rows, target):
    # Prefer the biggest tile <= target that divides `rows` (no padding pass).
    for cand in (target, 512, 256, 128, 64, 32, 16, 8):
        if cand <= max(rows, 8) and cand <= target and rows % cand == 0:
            return cand
    return min(target, max(8, rows))                 # fallback -> padded path


def mlp_residual_pallas(shortcut2d, attn2d, g2, be2, w1_bf16, bb1, w2_bf16,
                        bb2, target_tile=256):
    R, C = shortcut2d.shape
    Hd = w1_bf16.shape[1]
    tm = _pick_row_tile(R, target_tile)
    n_blocks = pl.cdiv(R, tm)
    Rp = n_blocks * tm
    if Rp != R:                                      # rare: ragged tail
        pad = ((0, Rp - R), (0, 0))
        shortcut2d = jnp.pad(shortcut2d, pad)
        attn2d = jnp.pad(attn2d, pad)
    # NOTE: at real Swin widths (C=768, hidden=3072) add a hidden-dim
    # reduction grid axis / vmem_limit_bytes so fc1+fc2 weights are tiled
    # instead of fully (double-)resident; unnecessary at demo scale.
    out = pl.pallas_call(
        _mlp_kernel,
        out_shape=jax.ShapeDtypeStruct((Rp, C), shortcut2d.dtype),
        grid=(n_blocks,),
        in_specs=[
            pl.BlockSpec((tm, C), lambda i: (i, 0)),     # shortcut rows
            pl.BlockSpec((tm, C), lambda i: (i, 0)),     # attention rows
            pl.BlockSpec((1, C), lambda i: (0, 0)),      # norm2 gamma
            pl.BlockSpec((1, C), lambda i: (0, 0)),      # norm2 beta
            pl.BlockSpec((C, Hd), lambda i: (0, 0)),     # fc1 weight (bf16)
            pl.BlockSpec((1, Hd), lambda i: (0, 0)),     # fc1 bias
            pl.BlockSpec((Hd, C), lambda i: (0, 0)),     # fc2 weight (bf16)
            pl.BlockSpec((1, C), lambda i: (0, 0)),      # fc2 bias
        ],
        out_specs=pl.BlockSpec((tm, C), lambda i: (i, 0)),
        compiler_params=pltpu.CompilerParams(dimension_semantics=("parallel",)),
    )(shortcut2d, attn2d, g2, be2, w1_bf16, bb1, w2_bf16, bb2)
    return out[:R] if Rp != R else out


# ----------------------------------------------------------------------------
# Weight pre-packing (per-call here; in a real model done once at load time)
# ----------------------------------------------------------------------------
def _pack_attention_weights(p, C, nh, ws, H, W, shift):
    hd = C // nh
    N = ws * ws
    nW = (H // ws) * (W // ws)
    scale = hd ** (-0.5)

    # fold qk scale into the Q columns of the qkv projection
    qscale = jnp.concatenate([jnp.full((C,), scale, jnp.float32),
                              jnp.ones((2 * C,), jnp.float32)])
    wqkv = p["wqkv"] * qscale[None, :]                       # (C, 3C)
    bqkv = p["bqkv"] * qscale[None, :]                       # (1, 3C)

    # group columns by head -> (nh, C, 3*hd) with per-head [q | k | v]
    wq = wqkv[:, :C].reshape(C, nh, hd)
    wk = wqkv[:, C:2 * C].reshape(C, nh, hd)
    wv = wqkv[:, 2 * C:].reshape(C, nh, hd)
    w3 = jnp.concatenate([wq, wk, wv], axis=-1)              # (C, nh, 3hd)
    w3 = jnp.transpose(w3, (1, 0, 2)).astype(jnp.bfloat16)   # (nh, C, 3hd)

    bq = bqkv[0, :C].reshape(nh, hd)
    bk = bqkv[0, C:2 * C].reshape(nh, hd)
    bv = bqkv[0, 2 * C:].reshape(nh, hd)
    b3 = jnp.concatenate([bq, bk, bv], axis=-1).reshape(nh, 1, 3 * hd)
    b3 = b3.astype(jnp.float32)

    # output projection rows grouped by head
    wproj_heads = p["wproj"].reshape(nh, hd, C).astype(jnp.bfloat16)

    # rel-pos bias (+ shift mask).  shift==0 keeps the window axis size 1 and
    # broadcasts in-kernel instead of materializing the nW-fold copy.
    rpi = jnp.asarray(relative_position_index_np(ws).reshape(-1))
    rel_bias = p["rpb_table"][rpi].reshape(N, N, nh).transpose(2, 0, 1)  # (nh,N,N)
    if shift > 0:
        mask = jnp.asarray(calculate_mask_np(H, W, ws, shift))           # (nW,N,N)
        bm = rel_bias[:, None] + mask[None]                              # (nh,nW,N,N)
    else:
        bm = rel_bias[:, None]                                           # (nh,1,N,N)
    return w3, b3, bm.astype(jnp.float32), wproj_heads


# ----------------------------------------------------------------------------
# Full SwinTransformerBlock forward
# ----------------------------------------------------------------------------
def swin_block_forward(x, x_size, p, cfg):
    H, W = x_size
    B, L, C = x.shape
    ws, shift, nh = cfg["window_size"], cfg["shift_size"], cfg["num_heads"]
    N = ws * ws
    nW = (H // ws) * (W // ws)

    w3, b3, bias_mask, wproj_heads = _pack_attention_weights(p, C, nh, ws, H, W, shift)

    shortcut = x
    # norm1 is fused inside the attention kernel (commutes with roll/partition)
    xr = x.reshape(B, H, W, C)
    if shift > 0:
        xr = jnp.roll(xr, shift=(-shift, -shift), axis=(1, 2))
    xw = window_partition(xr, ws).reshape(B * nW, N, C)                  # (B*nW,N,C)

    attn = window_attention_pallas(xw, p["g1"], p["b1"], w3, b3, bias_mask,
                                   wproj_heads, p["bproj"], nh, nW)

    attn = attn.reshape(B * nW, ws, ws, C)
    xr = window_reverse(attn, ws, H, W)
    if shift > 0:
        xr = jnp.roll(xr, shift=(shift, shift), axis=(1, 2))
    attn_tokens = xr.reshape(B * L, C)
    # TODO(synk): at real resolutions the window_reverse + roll above is an
    # extra HBM pass; it can be folded away by feeding kernel 2 in window
    # order and gathering shortcut rows via a precomputed permutation.

    out = mlp_residual_pallas(shortcut.reshape(B * L, C), attn_tokens,
                              p["g2"], p["be2"],
                              p["w1"].astype(jnp.bfloat16), p["bb1"],
                              p["w2"].astype(jnp.bfloat16), p["bb2"],
                              target_tile=cfg["mlp_row_tile"])
    return out.reshape(B, L, C)


# ----------------------------------------------------------------------------
# Pure-JAX f32 reference (mirrors the PyTorch math) for a correctness check
# ----------------------------------------------------------------------------
def reference_forward(x, x_size, p, cfg):
    H, W = x_size
    B, L, C = x.shape
    ws, shift, nh = cfg["window_size"], cfg["shift_size"], cfg["num_heads"]
    hd = C // nh
    scale = hd ** (-0.5)
    N = ws * ws
    nW = (H // ws) * (W // ws)

    def ln(z, g, b):
        mu = jnp.mean(z, -1, keepdims=True)
        var = jnp.mean(jnp.square(z - mu), -1, keepdims=True)
        return (z - mu) / jnp.sqrt(var + 1e-5) * g + b

    rpi = jnp.asarray(relative_position_index_np(ws).reshape(-1))
    rel_bias = p["rpb_table"][rpi].reshape(N, N, nh).transpose(2, 0, 1)
    if shift > 0:
        mask = jnp.asarray(calculate_mask_np(H, W, ws, shift))
    else:
        mask = jnp.zeros((nW, N, N), jnp.float32)
    mask_full = jnp.tile(mask, (B, 1, 1))

    shortcut = x
    xn = ln(x, p["g1"], p["b1"])
    xr = xn.reshape(B, H, W, C)
    if shift > 0:
        xr = jnp.roll(xr, (-shift, -shift), axis=(1, 2))
    xw = window_partition(xr, ws).reshape(-1, N, C)
    B_ = xw.shape[0]

    qkv = xw @ p["wqkv"] + p["bqkv"]
    qkv = qkv.reshape(B_, N, 3, nh, hd).transpose(2, 0, 3, 1, 4)
    q, k, v = qkv[0] * scale, qkv[1], qkv[2]
    attn = jnp.einsum("bhnd,bhmd->bhnm", q, k)
    attn = attn + rel_bias[None] + mask_full[:, None]
    attn = jax.nn.softmax(attn, axis=-1)
    out = jnp.einsum("bhnm,bhmd->bhnd", attn, v).transpose(0, 2, 1, 3).reshape(B_, N, C)
    out = out @ p["wproj"] + p["bproj"]

    out = out.reshape(-1, ws, ws, C)
    xr = window_reverse(out, ws, H, W)
    if shift > 0:
        xr = jnp.roll(xr, (shift, shift), axis=(1, 2))
    x = shortcut + xr.reshape(B, L, C)

    xn2 = ln(x, p["g2"], p["be2"])
    h = jax.nn.gelu(xn2 @ p["w1"] + p["bb1"], approximate=False)
    y = h @ p["w2"] + p["bb2"]
    return x + y


# ----------------------------------------------------------------------------
if __name__ == "__main__":
    # config: dim=128, input_resolution=(8,8), heads=4 (head_dim=32), window=4,
    # shift=2, mlp_ratio=2.0 (hidden=256).  C=128 keeps every kernel store a
    # full 128-lane unmasked vst (lane-dense output).
    B, H, W, C = 2, 8, 8, 128
    ws, shift, nh = 4, 2, 4
    mlp_ratio = 2.0
    hidden = int(C * mlp_ratio)
    L = H * W
    cfg = dict(window_size=ws, shift_size=shift, num_heads=nh, mlp_row_tile=256)

    key = jax.random.PRNGKey(0)
    ks = jax.random.split(key, 14)
    f32 = jnp.float32
    p = {
        "g1":        1.0 + 0.1 * jax.random.normal(ks[0], (1, C), f32),
        "b1":        0.1 * jax.random.normal(ks[1], (1, C), f32),
        "wqkv":      0.1 * jax.random.normal(ks[2], (C, 3 * C), f32),
        "bqkv":      0.1 * jax.random.normal(ks[3], (1, 3 * C), f32),
        "wproj":     0.1 * jax.random.normal(ks[4], (C, C), f32),
        "bproj":     0.1 * jax.random.normal(ks[5], (1, C), f32),
        "rpb_table": 0.02 * jax.random.normal(ks[6], ((2 * ws - 1) ** 2, nh), f32),
        "g2":        1.0 + 0.1 * jax.random.normal(ks[7], (1, C), f32),
        "be2":       0.1 * jax.random.normal(ks[8], (1, C), f32),
        "w1":        0.1 * jax.random.normal(ks[9], (C, hidden), f32),
        "bb1":       0.1 * jax.random.normal(ks[10], (1, hidden), f32),
        "w2":        0.1 * jax.random.normal(ks[11], (hidden, C), f32),
        "bb2":       0.1 * jax.random.normal(ks[12], (1, C), f32),
    }
    x = jax.random.normal(ks[13], (B, L, C), f32)

    out = swin_block_forward(x, (H, W), p, cfg)
    out = jax.block_until_ready(out)

    ref = jax.block_until_ready(reference_forward(x, (H, W), p, cfg))
    assert out.shape == (B, L, C)
    # Kernels use bf16 MXU operands (f32 accumulation / LN / softmax / GELU),
    # so the comparison against the all-f32 reference uses a correspondingly
    # relaxed tolerance (per review note on adopting bf16 operands).
    np.testing.assert_allclose(np.asarray(out), np.asarray(ref), rtol=3e-2, atol=5e-2)

    print("KERNEL_OK")
</pallas_src>

<mosaic_0001>
module attributes {stable_mosaic.version = 11 : i64} {
  func.func @_attn_kernel(%arg0: i32, %arg1: i32, %arg2: memref<4x16x128xf32, #tpu.memory_space<vmem>>, %arg3: memref<1x128xf32, #tpu.memory_space<vmem>>, %arg4: memref<1x128xf32, #tpu.memory_space<vmem>>, %arg5: memref<1x128x96xbf16, #tpu.memory_space<vmem>>, %arg6: memref<1x1x96xf32, #tpu.memory_space<vmem>>, %arg7: memref<1x4x16x16xf32, #tpu.memory_space<vmem>>, %arg8: memref<1x32x128xbf16, #tpu.memory_space<vmem>>, %arg9: memref<1x128xf32, #tpu.memory_space<vmem>>, %arg10: memref<64x128xf32, #tpu.memory_space<vmem>>, %arg11: memref<64x128xbf16, #tpu.memory_space<vmem>>) attributes {dimension_semantics = [#tpu.dimension_semantics<parallel>, #tpu.dimension_semantics<arbitrary>], iteration_bounds = array<i64: 2, 4>, scalar_prefetch = 0 : i64, scratch_operands = 1 : i64, tpu.core_type = #tpu.core_type<tc>, window_params = [{transform_indices = @transform_0, window_bounds = array<i64: 4, 16, 128>}, {pipeline_mode = #tpu.pipeline_mode<synchronous>, transform_indices = @transform_1, window_bounds = array<i64: 1, 128>}, {pipeline_mode = #tpu.pipeline_mode<synchronous>, transform_indices = @transform_2, window_bounds = array<i64: 1, 128>}, {transform_indices = @transform_3, window_bounds = array<i64: 1, 128, 96>}, {transform_indices = @transform_4, window_bounds = array<i64: 1, 1, 96>}, {transform_indices = @transform_5, window_bounds = array<i64: 1, 4, 16, 16>}, {transform_indices = @transform_6, window_bounds = array<i64: 1, 32, 128>}, {pipeline_mode = #tpu.pipeline_mode<synchronous>, transform_indices = @transform_7, window_bounds = array<i64: 1, 128>}, {transform_indices = @transform_8, window_bounds = array<i64: 64, 128>}]} {
    %c0_i32 = arith.constant 0 : i32
    %0 = arith.cmpi eq, %arg1, %c0_i32 : i32
    %1 = arith.extui %0 : i1 to i32
    %c0_i32_0 = arith.constant 0 : i32
    %2 = arith.cmpi ne, %1, %c0_i32_0 : i32
    scf.if %2 {
      %c0_24 = arith.constant 0 : index
      %c0_25 = arith.constant 0 : index
      %c0_26 = arith.constant 0 : index
      %44 = vector.load %arg2[%c0_24, %c0_25, %c0_26] : memref<4x16x128xf32, #tpu.memory_space<vmem>>, vector<4x16x128xf32>
      %cst_27 = arith.constant dense<0.000000e+00> : vector<4x16xf32>
      %45 = vector.multi_reduction <add>, %44, %cst_27 [2] : vector<4x16x128xf32> to vector<4x16xf32>
      %46 = vector.shape_cast %45 : vector<4x16xf32> to vector<4x16x1xf32>
      %cst_28 = arith.constant 1.280000e+02 : f32
      %47 = vector.broadcast %cst_28 : f32 to vector<4x16x1xf32>
      %48 = arith.divf %46, %47 : vector<4x16x1xf32>
      %49 = vector.broadcast %48 : vector<4x16x1xf32> to vector<4x16x128xf32>
      %50 = arith.subf %44, %49 : vector<4x16x128xf32>
      %51 = arith.mulf %50, %50 : vector<4x16x128xf32>
      %cst_29 = arith.constant dense<0.000000e+00> : vector<4x16xf32>
      %52 = vector.multi_reduction <add>, %51, %cst_29 [2] : vector<4x16x128xf32> to vector<4x16xf32>
      %53 = vector.shape_cast %52 : vector<4x16xf32> to vector<4x16x1xf32>
      %cst_30 = arith.constant 1.280000e+02 : f32
      %54 = vector.broadcast %cst_30 : f32 to vector<4x16x1xf32>
      %55 = arith.divf %53, %54 : vector<4x16x1xf32>
      %56 = vector.broadcast %48 : vector<4x16x1xf32> to vector<4x16x128xf32>
      %57 = arith.subf %44, %56 : vector<4x16x128xf32>
      %cst_31 = arith.constant 9.99999974E-6 : f32
      %58 = vector.broadcast %cst_31 : f32 to vector<4x16x1xf32>
      %59 = arith.addf %55, %58 : vector<4x16x1xf32>
      %60 = math.rsqrt %59 : vector<4x16x1xf32>
      %61 = vector.broadcast %60 : vector<4x16x1xf32> to vector<4x16x128xf32>
      %62 = arith.mulf %57, %61 : vector<4x16x128xf32>
      %c0_32 = arith.constant 0 : index
      %c0_33 = arith.constant 0 : index
      %63 = vector.load %arg3[%c0_32, %c0_33] : memref<1x128xf32, #tpu.memory_space<vmem>>, vector<1x128xf32>
      %64 = vector.shape_cast %63 : vector<1x128xf32> to vector<1x1x128xf32>
      %65 = vector.broadcast %64 : vector<1x1x128xf32> to vector<4x16x128xf32>
      %66 = arith.mulf %62, %65 : vector<4x16x128xf32>
      %c0_34 = arith.constant 0 : index
      %c0_35 = arith.constant 0 : index
      %67 = vector.load %arg4[%c0_34, %c0_35] : memref<1x128xf32, #tpu.memory_space<vmem>>, vector<1x128xf32>
      %68 = vector.shape_cast %67 : vector<1x128xf32> to vector<1x1x128xf32>
      %69 = vector.broadcast %68 : vector<1x1x128xf32> to vector<4x16x128xf32>
      %70 = arith.addf %66, %69 : vector<4x16x128xf32>
      %71 = vector.shape_cast %70 : vector<4x16x128xf32> to vector<64x128xf32>
      %72 = arith.truncf %71 : vector<64x128xf32> to vector<64x128xbf16>
      %c0_36 = arith.constant 0 : index
      %c0_37 = arith.constant 0 : index
      %73 = vector.load %arg11[%c0_36, %c0_37] : memref<64x128xbf16, #tpu.memory_space<vmem>>, vector<64x128xbf16>
      tpu.vector_store %arg11[%c0_36, %c0_37], %72 {strides = array<i32>} : memref<64x128xbf16, #tpu.memory_space<vmem>>, vector<64x128xbf16>,
      %c0_38 = arith.constant 0 : index
      %c0_39 = arith.constant 0 : index
      %74 = vector.load %arg9[%c0_38, %c0_39] : memref<1x128xf32, #tpu.memory_space<vmem>>, vector<1x128xf32>
      %75 = vector.shape_cast %74 : vector<1x128xf32> to vector<1x128xf32>
      %76 = vector.broadcast %75 : vector<1x128xf32> to vector<64x128xf32>
      %c0_40 = arith.constant 0 : index
      %c0_41 = arith.constant 0 : index
      %77 = vector.load %arg10[%c0_40, %c0_41] : memref<64x128xf32, #tpu.memory_space<vmem>>, vector<64x128xf32>
      tpu.vector_store %arg10[%c0_40, %c0_41], %76 {strides = array<i32>} : memref<64x128xf32, #tpu.memory_space<vmem>>, vector<64x128xf32>,
    } else {
    }
    %c0 = arith.constant 0 : index
    %c0_1 = arith.constant 0 : index
    %3 = vector.load %arg11[%c0, %c0_1] : memref<64x128xbf16, #tpu.memory_space<vmem>>, vector<64x128xbf16>
    %c0_2 = arith.constant 0 : index
    %c0_3 = arith.constant 0 : index
    %c0_4 = arith.constant 0 : index
    %4 = vector.load %arg5[%c0_2, %c0_3, %c0_4] : memref<1x128x96xbf16, #tpu.memory_space<vmem>>, vector<1x128x96xbf16>
    %5 = vector.shape_cast %4 : vector<1x128x96xbf16> to vector<128x96xbf16>
    %cst = arith.constant dense<0.000000e+00> : vector<64x96xf32>
    %6 = tpu.matmul %3, %5, %cst {dimension_numbers = #tpu.dot_dimension_numbers<[1], [0], [0], [1], [0, 0, 1, 1], [], []>} : vector<64x128xbf16>, vector<128x96xbf16>, vector<64x96xf32> -> vector<64x96xf32>
    %c0_5 = arith.constant 0 : index
    %c0_6 = arith.constant 0 : index
    %c0_7 = arith.constant 0 : index
    %7 = vector.load %arg6[%c0_5, %c0_6, %c0_7] : memref<1x1x96xf32, #tpu.memory_space<vmem>>, vector<1x1x96xf32>
    %8 = vector.shape_cast %7 : vector<1x1x96xf32> to vector<1x96xf32>
    %9 = vector.broadcast %8 : vector<1x96xf32> to vector<64x96xf32>
    %10 = arith.addf %6, %9 : vector<64x96xf32>
    %11 = vector.extract_strided_slice %10 {offsets = [0, 0], sizes = [64, 32], strides = [1, 1]} : vector<64x96xf32> to vector<64x32xf32>
    %12 = vector.shape_cast %11 : vector<64x32xf32> to vector<4x16x32xf32>
    %13 = arith.truncf %12 : vector<4x16x32xf32> to vector<4x16x32xbf16>
    %14 = vector.extract_strided_slice %10 {offsets = [0, 32], sizes = [64, 32], strides = [1, 1]} : vector<64x96xf32> to vector<64x32xf32>
    %15 = vector.shape_cast %14 : vector<64x32xf32> to vector<4x16x32xf32>
    %16 = arith.truncf %15 : vector<4x16x32xf32> to vector<4x16x32xbf16>
    %17 = vector.extract_strided_slice %10 {offsets = [0, 64], sizes = [64, 32], strides = [1, 1]} : vector<64x96xf32> to vector<64x32xf32>
    %18 = vector.shape_cast %17 : vector<64x32xf32> to vector<4x16x32xf32>
    %19 = arith.truncf %18 : vector<4x16x32xf32> to vector<4x16x32xbf16>
    "tpu.trace_start"() <{level = 10 : i32, message = "wnd,wmd->wnm"}> : () -> ()
    %cst_8 = arith.constant dense<0.000000e+00> : vector<4x16x16xf32>
    %20 = tpu.matmul %13, %16, %cst_8 {dimension_numbers = #tpu.dot_dimension_numbers<[2], [2], [1], [1], [0, 0, 0, 1, 1, 1], [0], [0]>} : vector<4x16x32xbf16>, vector<4x16x32xbf16>, vector<4x16x16xf32> -> vector<4x16x16xf32>
    "tpu.trace_stop"() : () -> ()
    %c0_9 = arith.constant 0 : index
    %c0_10 = arith.constant 0 : index
    %c0_11 = arith.constant 0 : index
    %c0_12 = arith.constant 0 : index
    %21 = vector.load %arg7[%c0_9, %c0_10, %c0_11, %c0_12] : memref<1x4x16x16xf32, #tpu.memory_space<vmem>>, vector<1x4x16x16xf32>
    %22 = vector.shape_cast %21 : vector<1x4x16x16xf32> to vector<4x16x16xf32>
    %23 = arith.addf %20, %22 : vector<4x16x16xf32>
    %cst_13 = arith.constant dense<0xFF800000> : vector<4x16xf32>
    %24 = vector.multi_reduction <maximumf>, %23, %cst_13 [2] : vector<4x16x16xf32> to vector<4x16xf32>
    %25 = vector.shape_cast %24 : vector<4x16xf32> to vector<4x16x1xf32>
    %26 = vector.broadcast %25 : vector<4x16x1xf32> to vector<4x16x16xf32>
    %27 = arith.subf %23, %26 : vector<4x16x16xf32>
    %28 = math.exp %27 : vector<4x16x16xf32>
    %cst_14 = arith.constant dense<0.000000e+00> : vector<4x16xf32>
    %29 = vector.multi_reduction <add>, %28, %cst_14 [2] : vector<4x16x16xf32> to vector<4x16xf32>
    %30 = vector.shape_cast %29 : vector<4x16xf32> to vector<4x16x1xf32>
    %31 = tpu.reciprocal %30 {approx = true} : vector<4x16x1xf32> -> vector<4x16x1xf32>
    %32 = vector.broadcast %31 : vector<4x16x1xf32> to vector<4x16x16xf32>
    %33 = arith.mulf %28, %32 : vector<4x16x16xf32>
    %34 = arith.truncf %33 : vector<4x16x16xf32> to vector<4x16x16xbf16>
    "tpu.trace_start"() <{level = 10 : i32, message = "wnm,wmd->wnd"}> : () -> ()
    %cst_15 = arith.constant dense<0.000000e+00> : vector<4x16x32xf32>
    %35 = tpu.matmul %34, %19, %cst_15 {dimension_numbers = #tpu.dot_dimension_numbers<[2], [1], [1], [2], [0, 0, 0, 1, 1, 2], [0], [0]>} : vector<4x16x16xbf16>, vector<4x16x32xbf16>, vector<4x16x32xf32> -> vector<4x16x32xf32>
    "tpu.trace_stop"() : () -> ()
    %36 = vector.shape_cast %35 : vector<4x16x32xf32> to vector<64x32xf32>
    %37 = arith.truncf %36 : vector<64x32xf32> to vector<64x32xbf16>
    %c0_16 = arith.constant 0 : index
    %c0_17 = arith.constant 0 : index
    %c0_18 = arith.constant 0 : index
    %38 = vector.load %arg8[%c0_16, %c0_17, %c0_18] : memref<1x32x128xbf16, #tpu.memory_space<vmem>>, vector<1x32x128xbf16>
    %39 = vector.shape_cast %38 : vector<1x32x128xbf16> to vector<32x128xbf16>
    %cst_19 = arith.constant dense<0.000000e+00> : vector<64x128xf32>
    %40 = tpu.matmul %37, %39, %cst_19 {dimension_numbers = #tpu.dot_dimension_numbers<[1], [0], [0], [1], [0, 0, 1, 1], [], []>} : vector<64x32xbf16>, vector<32x128xbf16>, vector<64x128xf32> -> vector<64x128xf32>
    %c0_20 = arith.constant 0 : index
    %c0_21 = arith.constant 0 : index
    %41 = vector.load %arg10[%c0_20, %c0_21] : memref<64x128xf32, #tpu.memory_space<vmem>>, vector<64x128xf32>
    %42 = arith.addf %41, %40 : vector<64x128xf32>
    %c0_22 = arith.constant 0 : index
    %c0_23 = arith.constant 0 : index
    %43 = vector.load %arg10[%c0_22, %c0_23] : memref<64x128xf32, #tpu.memory_space<vmem>>, vector<64x128xf32>
    tpu.vector_store %arg10[%c0_22, %c0_23], %42 {strides = array<i32>} : memref<64x128xf32, #tpu.memory_space<vmem>>, vector<64x128xf32>,
    return
  }
  func.func @transform_0(%arg0: i32, %arg1: i32) -> (i32, i32, i32) {
    %c0_i32 = arith.constant 0 : i32
    %c0_i32_0 = arith.constant 0 : i32
    %c0_i32_1 = arith.constant 0 : i32
    return %arg0, %c0_i32, %c0_i32_0 : i32, i32, i32
  }
  func.func @transform_1(%arg0: i32, %arg1: i32) -> (i32, i32) {
    %c0_i32 = arith.constant 0 : i32
    %c0_i32_0 = arith.constant 0 : i32
    %c0_i32_1 = arith.constant 0 : i32
    return %c0_i32, %c0_i32_0 : i32, i32
  }
  func.func @transform_2(%arg0: i32, %arg1: i32) -> (i32, i32) {
    %c0_i32 = arith.constant 0 : i32
    %c0_i32_0 = arith.constant 0 : i32
    %c0_i32_1 = arith.constant 0 : i32
    return %c0_i32, %c0_i32_0 : i32, i32
  }
  func.func @transform_3(%arg0: i32, %arg1: i32) -> (i32, i32, i32) {
    %c0_i32 = arith.constant 0 : i32
    %c0_i32_0 = arith.constant 0 : i32
    %c0_i32_1 = arith.constant 0 : i32
    return %arg1, %c0_i32, %c0_i32_0 : i32, i32, i32
  }
  func.func @transform_4(%arg0: i32, %arg1: i32) -> (i32, i32, i32) {
    %c0_i32 = arith.constant 0 : i32
    %c0_i32_0 = arith.constant 0 : i32
    %c0_i32_1 = arith.constant 0 : i32
    return %arg1, %c0_i32, %c0_i32_0 : i32, i32, i32
  }
  func.func @transform_5(%arg0: i32, %arg1: i32) -> (i32, i32, i32, i32) {
    %c0_i32 = arith.constant 0 : i32
    %c0_i32_0 = arith.constant 0 : i32
    %c0_i32_1 = arith.constant 0 : i32
    %c0_i32_2 = arith.constant 0 : i32
    return %arg1, %c0_i32, %c0_i32_0, %c0_i32_1 : i32, i32, i32, i32
  }
  func.func @transform_6(%arg0: i32, %arg1: i32) -> (i32, i32, i32) {
    %c0_i32 = arith.constant 0 : i32
    %c0_i32_0 = arith.constant 0 : i32
    %c0_i32_1 = arith.constant 0 : i32
    return %arg1, %c0_i32, %c0_i32_0 : i32, i32, i32
  }
  func.func @transform_7(%arg0: i32, %arg1: i32) -> (i32, i32) {
    %c0_i32 = arith.constant 0 : i32
    %c0_i32_0 = arith.constant 0 : i32
    %c0_i32_1 = arith.constant 0 : i32
    return %c0_i32, %c0_i32_0 : i32, i32
  }
  func.func @transform_8(%arg0: i32, %arg1: i32) -> (i32, i32) {
    %c0_i32 = arith.constant 0 : i32
    %c0_i32_0 = arith.constant 0 : i32
    return %arg0, %c0_i32 : i32, i32
  }
}

</mosaic_0001>

<llo_original>
// kernel: tpu_custom_call.1
$region0: #{tpu_custom_call.1}
  #allocation0 [shape = 'u32[]', space=smem, size = 0x4, offset = 0x4, fixed_abs, tag = 'smem constant byte address 0x4 - core index']
  #allocation1 [shape = 'u32[144,128]{1,0:T(1,128)}', space=vmem, size = 0x12000, scoped, tag = 'internal scratch']
  #allocation2 [shape = 'bf16[64,128]{1,0:T(16,128)(2,1)}', space=vmem, size = 0x4000, scoped, tag = 'scratch operand']
  %s0 = inlined_call_operand.vmem [shape: f32[8,16,128], index: 0, kind: input, shape index: {}]
  %s1 = inlined_call_operand.vmem [shape: f32[1,128], index: 1, kind: input, shape index: {}]
  %s2 = inlined_call_operand.vmem [shape: f32[1,128], index: 2, kind: input, shape index: {}]
  %s3 = inlined_call_operand.vmem [shape: bf16[4,128,96], index: 3, kind: input, shape index: {}]
  %s4 = inlined_call_operand.vmem [shape: f32[4,1,96], index: 4, kind: input, shape index: {}]
  %s5 = inlined_call_operand.vmem [shape: f32[4,4,16,16], index: 5, kind: input, shape index: {}]
  %s6 = inlined_call_operand.vmem [shape: bf16[4,32,128], index: 6, kind: input, shape index: {}]
  %s7 = inlined_call_operand.vmem [shape: f32[1,128], index: 7, kind: input, shape index: {}]
  %s8 = inlined_call_operand.hbm [shape: f32[128,128], index: 8, kind: output, shape index: {}]
  %s9 = sld [smem:[#allocation0]]
  $region69: #{tpu_custom_call.1} parent=0
    _
  %s11 = ssub.s32 1, %s9
  %s12 = scalar_select 0, %s11, %s9
  $region1: #{tpu_custom_call.1} parent=0
    #allocation3 [shape = 'u8[65536]{0}', space=vmem, size = 0x10000, scoped, tag = 'output window, operand 0']
    #allocation4 [shape = 's32[2]{0}', space=sflag, size = 0x8, scoped, tag = 'scoped memory for tpu_custom_call.1']
    %13 = vsyncpa [#allocation4], 0
    %s14 = scalar_lea.sflag [#allocation4], 1
    %15 = vsyncpa %s14, 0
    loop: start=0, step=1, limit=10
    $region2: #{tpu_custom_call.1} parent=1 // loop_pre_header
      _
    $region3: #{tpu_custom_call.1} parent=1 // loop_header
      %s17 = sphi 0, %s21
      %p18 = scmp.ge.s32.totalorder %s17, 10
      %s24 = sphi 0, %s36
      %s25 = sphi 0, %s32
      %s26 = sphi 0, %s24
      %s27 = sphi 0, %s25
      %s28 = sphi 0, %s26
      %s29 = sphi 0, %s27
      %s39 = sphi 0, %s41
      %s42 = sphi 0, %s39
      %s43 = sphi 0, %s42
      %s59 = sphi 0, %s43
      %s63 = sphi 0, %s63
      %s65 = sphi 0, %s63
      %s66 = sphi 0, %s65
      %s80 = sphi 0, %s66
      %s84 = sphi 0, %s84
      %s86 = sphi 0, %s84
      %s87 = sphi 0, %s86
      %s101 = sphi 0, %s87
      %s107 = sphi 0, %s109
      %s110 = sphi 0, %s107
      %s111 = sphi 0, %s110
      %s127 = sphi 0, %s111
      %s133 = sphi 0, %s135
      %s136 = sphi 0, %s133
      %s137 = sphi 0, %s136
      %s153 = sphi 0, %s137
      %s159 = sphi 0, %s161
      %s162 = sphi 0, %s159
      %s163 = sphi 0, %s162
      %s179 = sphi 0, %s163
      %s185 = sphi 0, %s187
      %s188 = sphi 0, %s185
      %s189 = sphi 0, %s188
      %s205 = sphi 0, %s189
      %s209 = sphi 0, %s209
      %s211 = sphi 0, %s209
      %s212 = sphi 0, %s211
      %s226 = sphi 0, %s212
      %s232 = sphi 0, %s234
      %s235 = sphi 0, %s232
      %s236 = sphi 0, %s235
      %s252 = sphi 0, %s236
    $region4: #{tpu_custom_call.1} parent=1 // loop_header_branch
      %20 = sbr.rel (%p18) target = $region8
    $region5: #{tpu_custom_call.1} parent=1 // loop_body
      %s22 = ssub.s32 %s17, 1
      %s23 = ssub.s32 %s17, 2
      %s30 = sadd.s32 1, %s25
      %p31 = scmp.ge.s32.totalorder %s30, 4
      %s32 = scalar_select %p31, 0, %s30
      %s33 = sadd.s32 1, %s24
      %s34 = scalar_select %p31, %s33, %s24
      %p35 = scmp.ge.s32.totalorder %s34, 2
      %s36 = scalar_select %p35, 0, %s34
      %s37 = ssub.s32 %s24, %s36
      %p38 = scmp.eq.s32.totalorder %s37, 0
      %s40 = sadd.s32 %s39, 1
      %s41 = scalar_select %p38, %s39, %s40
      %p44 = pneg %p38
      %p45 = scmp.eq.s32.totalorder %s17, 7
      %p46 = por %p44, %p45
      %p47 = scmp.ne.s32.totalorder %s39, %s42
      %p48 = scmp.eq.s32.totalorder %s17, 0
      %p49 = por %p47, %p48
      %p50 = scmp.ne.s32.totalorder %s39, %s42
      %p51 = scmp.eq.s32.totalorder %s22, 7
      %p52 = por %p50, %p51
      %p53 = scmp.ne.s32.totalorder %s42, %s43
      %p54 = scmp.eq.s32.totalorder %s22, 0
      %p55 = por %p53, %p54
      %p56 = scmp.ne.s32.totalorder %s42, %s43
      %p57 = scmp.eq.s32.totalorder %s23, 7
      %p58 = por %p56, %p57
      %p60 = scmp.ne.s32.totalorder %s43, %s59
      %p61 = scmp.eq.s32.totalorder %s23, 0
      %p62 = por %p60, %p61
      %s64 = sadd.s32 %s63, 1
      %p67 = scmp.eq.s32.totalorder %s17, 7
      %p68 = scmp.ne.s32.totalorder %s63, %s65
      %p69 = scmp.eq.s32.totalorder %s17, 0
      %p70 = por %p68, %p69
      %p71 = scmp.ne.s32.totalorder %s63, %s65
      %p72 = scmp.eq.s32.totalorder %s22, 7
      %p73 = por %p71, %p72
      %p74 = scmp.ne.s32.totalorder %s65, %s66
      %p75 = scmp.eq.s32.totalorder %s22, 0
      %p76 = por %p74, %p75
      %p77 = scmp.ne.s32.totalorder %s65, %s66
      %p78 = scmp.eq.s32.totalorder %s23, 7
      %p79 = por %p77, %p78
      %p81 = scmp.ne.s32.totalorder %s66, %s80
      %p82 = scmp.eq.s32.totalorder %s23, 0
      %p83 = por %p81, %p82
      %s85 = sadd.s32 %s84, 1
      %p88 = scmp.eq.s32.totalorder %s17, 7
      %p89 = scmp.ne.s32.totalorder %s84, %s86
      %p90 = scmp.eq.s32.totalorder %s17, 0
      %p91 = por %p89, %p90
      %p92 = scmp.ne.s32.totalorder %s84, %s86
      %p93 = scmp.eq.s32.totalorder %s22, 7
      %p94 = por %p92, %p93
      %p95 = scmp.ne.s32.totalorder %s86, %s87
      %p96 = scmp.eq.s32.totalorder %s22, 0
      %p97 = por %p95, %p96
      %p98 = scmp.ne.s32.totalorder %s86, %s87
      %p99 = scmp.eq.s32.totalorder %s23, 7
      %p100 = por %p98, %p99
      %p102 = scmp.ne.s32.totalorder %s87, %s101
      %p103 = scmp.eq.s32.totalorder %s23, 0
      %p104 = por %p102, %p103
      %s105 = ssub.s32 %s25, %s32
      %p106 = scmp.eq.s32.totalorder %s105, 0
      %s108 = sadd.s32 %s107, 1
      %s109 = scalar_select %p106, %s107, %s108
      %p112 = pneg %p106
      %p113 = scmp.eq.s32.totalorder %s17, 7
      %p114 = por %p112, %p113
      %p115 = scmp.ne.s32.totalorder %s107, %s110
      %p116 = scmp.eq.s32.totalorder %s17, 0
      %p117 = por %p115, %p116
      %p118 = scmp.ne.s32.totalorder %s107, %s110
      %p119 = scmp.eq.s32.totalorder %s22, 7
      %p120 = por %p118, %p119
      %p121 = scmp.ne.s32.totalorder %s110, %s111
      %p122 = scmp.eq.s32.totalorder %s22, 0
      %p123 = por %p121, %p122
      %p124 = scmp.ne.s32.totalorder %s110, %s111
      %p125 = scmp.eq.s32.totalorder %s23, 7
      %p126 = por %p124, %p125
      %p128 = scmp.ne.s32.totalorder %s111, %s127
      %p129 = scmp.eq.s32.totalorder %s23, 0
      %p130 = por %p128, %p129
      %s131 = ssub.s32 %s25, %s32
      %p132 = scmp.eq.s32.totalorder %s131, 0
      %s134 = sadd.s32 %s133, 1
      %s135 = scalar_select %p132, %s133, %s134
      %p138 = pneg %p132
      %p139 = scmp.eq.s32.totalorder %s17, 7
      %p140 = por %p138, %p139
      %p141 = scmp.ne.s32.totalorder %s133, %s136
      %p142 = scmp.eq.s32.totalorder %s17, 0
      %p143 = por %p141, %p142
      %p144 = scmp.ne.s32.totalorder %s133, %s136
      %p145 = scmp.eq.s32.totalorder %s22, 7
      %p146 = por %p144, %p145
      %p147 = scmp.ne.s32.totalorder %s136, %s137
      %p148 = scmp.eq.s32.totalorder %s22, 0
      %p149 = por %p147, %p148
      %p150 = scmp.ne.s32.totalorder %s136, %s137
      %p151 = scmp.eq.s32.totalorder %s23, 7
      %p152 = por %p150, %p151
      %p154 = scmp.ne.s32.totalorder %s137, %s153
      %p155 = scmp.eq.s32.totalorder %s23, 0
      %p156 = por %p154, %p155
      %s157 = ssub.s32 %s25, %s32
      %p158 = scmp.eq.s32.totalorder %s157, 0
      %s160 = sadd.s32 %s159, 1
      %s161 = scalar_select %p158, %s159, %s160
      %p164 = pneg %p158
      %p165 = scmp.eq.s32.totalorder %s17, 7
      %p166 = por %p164, %p165
      %p167 = scmp.ne.s32.totalorder %s159, %s162
      %p168 = scmp.eq.s32.totalorder %s17, 0
      %p169 = por %p167, %p168
      %p170 = scmp.ne.s32.totalorder %s159, %s162
      %p171 = scmp.eq.s32.totalorder %s22, 7
      %p172 = por %p170, %p171
      %p173 = scmp.ne.s32.totalorder %s162, %s163
      %p174 = scmp.eq.s32.totalorder %s22, 0
      %p175 = por %p173, %p174
      %p176 = scmp.ne.s32.totalorder %s162, %s163
      %p177 = scmp.eq.s32.totalorder %s23, 7
      %p178 = por %p176, %p177
      %p180 = scmp.ne.s32.totalorder %s163, %s179
      %p181 = scmp.eq.s32.totalorder %s23, 0
      %p182 = por %p180, %p181
      %s183 = ssub.s32 %s25, %s32
      %p184 = scmp.eq.s32.totalorder %s183, 0
      %s186 = sadd.s32 %s185, 1
      %s187 = scalar_select %p184, %s185, %s186
      %p190 = pneg %p184
      %p191 = scmp.eq.s32.totalorder %s17, 7
      %p192 = por %p190, %p191
      %p193 = scmp.ne.s32.totalorder %s185, %s188
      %p194 = scmp.eq.s32.totalorder %s17, 0
      %p195 = por %p193, %p194
      %p196 = scmp.ne.s32.totalorder %s185, %s188
      %p197 = scmp.eq.s32.totalorder %s22, 7
      %p198 = por %p196, %p197
      %p199 = scmp.ne.s32.totalorder %s188, %s189
      %p200 = scmp.eq.s32.totalorder %s22, 0
      %p201 = por %p199, %p200
      %p202 = scmp.ne.s32.totalorder %s188, %s189
      %p203 = scmp.eq.s32.totalorder %s23, 7
      %p204 = por %p202, %p203
      %p206 = scmp.ne.s32.totalorder %s189, %s205
      %p207 = scmp.eq.s32.totalorder %s23, 0
      %p208 = por %p206, %p207
      %s210 = sadd.s32 %s209, 1
      %p213 = scmp.eq.s32.totalorder %s17, 7
      %p214 = scmp.ne.s32.totalorder %s209, %s211
      %p215 = scmp.eq.s32.totalorder %s17, 0
      %p216 = por %p214, %p215
      %p217 = scmp.ne.s32.totalorder %s209, %s211
      %p218 = scmp.eq.s32.totalorder %s22, 7
      %p219 = por %p217, %p218
      %p220 = scmp.ne.s32.totalorder %s211, %s212
      %p221 = scmp.eq.s32.totalorder %s22, 0
      %p222 = por %p220, %p221
      %p223 = scmp.ne.s32.totalorder %s211, %s212
      %p224 = scmp.eq.s32.totalorder %s23, 7
      %p225 = por %p223, %p224
      %p227 = scmp.ne.s32.totalorder %s212, %s226
      %p228 = scmp.eq.s32.totalorder %s23, 0
      %p229 = por %p227, %p228
      %s230 = ssub.s32 %s24, %s36
      %p231 = scmp.eq.s32.totalorder %s230, 0
      %s233 = sadd.s32 %s232, 1
      %s234 = scalar_select %p231, %s232, %s233
      %p237 = pneg %p231
      %p238 = scmp.eq.s32.totalorder %s17, 7
      %p239 = por %p237, %p238
      %p240 = scmp.ne.s32.totalorder %s232, %s235
      %p241 = scmp.eq.s32.totalorder %s17, 0
      %p242 = por %p240, %p241
      %p243 = scmp.ne.s32.totalorder %s232, %s235
      %p244 = scmp.eq.s32.totalorder %s22, 7
      %p245 = por %p243, %p244
      %p246 = scmp.ne.s32.totalorder %s235, %s236
      %p247 = scmp.eq.s32.totalorder %s22, 0
      %p248 = por %p246, %p247
      %p249 = scmp.ne.s32.totalorder %s235, %s236
      %p250 = scmp.eq.s32.totalorder %s23, 7
      %p251 = por %p249, %p250
      %p253 = scmp.ne.s32.totalorder %s236, %s252
      %p254 = scmp.eq.s32.totalorder %s23, 0
      %p255 = por %p253, %p254
      %p256 = scmp.le.s32.totalorder 1, %s17
      %p257 = scmp.lt.s32.totalorder %s17, 9
      %p258 = pnand %p256, %p257
      %p259 = pneg %p258
      // Predicated region
      $region9: #{tpu_custom_call.1} parent=5 // pred_check
        _
      $region10: #{tpu_custom_call.1} parent=5 // pred_check_branch
        %261 = sbr.rel (%p258) target = $region12
      $region11: #{tpu_custom_call.1} parent=5 // pred_region
        %s262 = ssub.s32 %s17, 1
        // Predicated region
        $region13: #{tpu_custom_call.1} parent=11 // pred_check
          %p263 = pneg %p76
        $region14: #{tpu_custom_call.1} parent=11 // pred_check_branch
          %265 = sbr.rel (%p263) target = $region16
        $region15: #{tpu_custom_call.1} parent=11 // pred_region
          _
        $region16: #{tpu_custom_call.1} parent=11 // pred_fallthru
          _
        // Predicated region
        $region17: #{tpu_custom_call.1} parent=11 // pred_check
          %p266 = pneg %p97
        $region18: #{tpu_custom_call.1} parent=11 // pred_check_branch
          %268 = sbr.rel (%p266) target = $region20
        $region19: #{tpu_custom_call.1} parent=11 // pred_region
          _
        $region20: #{tpu_custom_call.1} parent=11 // pred_fallthru
          _
        // Predicated region
        $region21: #{tpu_custom_call.1} parent=11 // pred_check
          %p269 = pneg %p222
        $region22: #{tpu_custom_call.1} parent=11 // pred_check_branch
          %271 = sbr.rel (%p269) target = $region24
        $region23: #{tpu_custom_call.1} parent=11 // pred_region
          _
        $region24: #{tpu_custom_call.1} parent=11 // pred_fallthru
          _
      $region12: #{tpu_custom_call.1} parent=5 // pred_fallthru
        _
      %p272 = scmp.lt.s32.totalorder %s17, 8
      // Predicated region
      $region25: #{tpu_custom_call.1} parent=5 // pred_check
        %p273 = pneg %p272
      $region26: #{tpu_custom_call.1} parent=5 // pred_check_branch
        %275 = sbr.rel (%p273) target = $region28
      $region27: #{tpu_custom_call.1} parent=5 // pred_region
        // Predicated region
        $region29: #{tpu_custom_call.1} parent=27 // pred_check
          %p276 = pneg %p49
        $region30: #{tpu_custom_call.1} parent=27 // pred_check_branch
          %278 = sbr.rel (%p276) target = $region32
        $region31: #{tpu_custom_call.1} parent=27 // pred_region
          %s279 = smul.u32 4, %s24
          %p280 = scmp.lt.s32.totalorder %s279, 7
          %s281 = scalar_select %p280, %s279, 7
          %s282 = smul.addr %s281, 2
          %s283 = smul.addr %s282, 8
          %s284 = scalar_lea.vmem %s0, %s283
          %s285 = smul.u32 4, %s24
        $region32: #{tpu_custom_call.1} parent=27 // pred_fallthru
          _
        // Predicated region
        $region33: #{tpu_custom_call.1} parent=27 // pred_check
          %p286 = pneg %p117
        $region34: #{tpu_custom_call.1} parent=27 // pred_check_branch
          %288 = sbr.rel (%p286) target = $region36
        $region35: #{tpu_custom_call.1} parent=27 // pred_region
          %p289 = scmp.lt.s32.totalorder %s25, 3
          %s290 = scalar_select %p289, %s25, 3
          %s291 = smul.addr %s290, 16
          %s292 = smul.addr %s291, 4
          %s293 = scalar_lea.vmem %s3, %s292
        $region36: #{tpu_custom_call.1} parent=27 // pred_fallthru
          _
        // Predicated region
        $region37: #{tpu_custom_call.1} parent=27 // pred_check
          %p294 = pneg %p143
        $region38: #{tpu_custom_call.1} parent=27 // pred_check_branch
          %296 = sbr.rel (%p294) target = $region40
        $region39: #{tpu_custom_call.1} parent=27 // pred_region
          %p297 = scmp.lt.s32.totalorder %s25, 3
          %s298 = scalar_select %p297, %s25, 3
          %s299 = scalar_lea.vmem %s4, %s298
        $region40: #{tpu_custom_call.1} parent=27 // pred_fallthru
          _
        // Predicated region
        $region41: #{tpu_custom_call.1} parent=27 // pred_check
          %p300 = pneg %p169
        $region42: #{tpu_custom_call.1} parent=27 // pred_check_branch
          %302 = sbr.rel (%p300) target = $region44
        $region43: #{tpu_custom_call.1} parent=27 // pred_region
          %p303 = scmp.lt.s32.totalorder %s25, 3
          %s304 = scalar_select %p303, %s25, 3
          %s305 = smul.addr %s304, 8
          %s306 = smul.addr %s305, 8
          %s307 = scalar_lea.vmem %s5, %s306
        $region44: #{tpu_custom_call.1} parent=27 // pred_fallthru
          _
        // Predicated region
        $region45: #{tpu_custom_call.1} parent=27 // pred_check
          %p308 = pneg %p195
        $region46: #{tpu_custom_call.1} parent=27 // pred_check_branch
          %310 = sbr.rel (%p308) target = $region48
        $region47: #{tpu_custom_call.1} parent=27 // pred_region
          %p311 = scmp.lt.s32.totalorder %s25, 3
          %s312 = scalar_select %p311, %s25, 3
          %s313 = smul.addr %s312, 4
          %s314 = smul.addr %s313, 4
          %s315 = scalar_lea.vmem %s6, %s314
        $region48: #{tpu_custom_call.1} parent=27 // pred_fallthru
          _
      $region28: #{tpu_custom_call.1} parent=5 // pred_fallthru
        _
      %p316 = scmp.le.s32.totalorder 1, %s17
      %p317 = scmp.lt.s32.totalorder %s17, 9
      %p318 = pnand %p316, %p317
      %p319 = pneg %p318
      // Predicated region
      $region49: #{tpu_custom_call.1} parent=5 // pred_check
        _
      $region50: #{tpu_custom_call.1} parent=5 // pred_check_branch
        %321 = sbr.rel (%p318) target = $region52
      $region51: #{tpu_custom_call.1} parent=5 // pred_region
        %s322 = ssub.s32 %s17, 1
        %s323 = smul.u32 4, %s26
        %p324 = scmp.lt.s32.totalorder %s323, 7
        %s325 = scalar_select %p324, %s323, 7
        %s326 = smul.addr %s325, 2
        %s327 = smul.addr %s326, 8
        %s328 = scalar_lea.vmem %s0, %s327
        %p329 = pneg %p55
        %p330 = pneg %p52
        %p331 = pneg %p76
        %p332 = pneg %p73
        %p333 = pneg %p97
        %p334 = pneg %p94
        %p335 = scmp.lt.s32.totalorder %s27, 3
        %s336 = scalar_select %p335, %s27, 3
        %s337 = smul.addr %s336, 16
        %s338 = smul.addr %s337, 4
        %s339 = scalar_lea.vmem %s3, %s338
        %p340 = pneg %p123
        %p341 = pneg %p120
        %p342 = scmp.lt.s32.totalorder %s27, 3
        %s343 = scalar_select %p342, %s27, 3
        %s344 = scalar_lea.vmem %s4, %s343
        %p345 = pneg %p149
        %p346 = pneg %p146
        %p347 = scmp.lt.s32.totalorder %s27, 3
        %s348 = scalar_select %p347, %s27, 3
        %s349 = smul.addr %s348, 8
        %s350 = smul.addr %s349, 8
        %s351 = scalar_lea.vmem %s5, %s350
        %p352 = pneg %p175
        %p353 = pneg %p172
        %p354 = scmp.lt.s32.totalorder %s27, 3
        %s355 = scalar_select %p354, %s27, 3
        %s356 = smul.addr %s355, 4
        %s357 = smul.addr %s356, 4
        %s358 = scalar_lea.vmem %s6, %s357
        %p359 = pneg %p201
        %p360 = pneg %p198
        %p361 = pneg %p222
        %p362 = pneg %p219
        %p363 = pneg %p248
        %p364 = pneg %p245
        %s365 = sand.u32 %s235, 1
        %s366 = scalar_lea.sflag [#allocation4], %s365
        %s367 = sand.u32 %s235, 1
        %s368 = smul.addr %s367, 64
        %s369 = scalar_lea.vmem [#allocation3], %s368
        %s370 = smul.u32 4, %s26
        %p371 = scmp.lt.s32.totalorder %s370, 7
        %s372 = scalar_select %p371, %s370, 7
        %s373 = smul.addr %s372, 2
        %s374 = smul.addr %s373, 8
        %s375 = scalar_lea.vmem %s0, %s374
        %s376 = smul.u32 4, %s26
        %p377 = scmp.lt.s32.totalorder %s27, 3
        %s378 = scalar_select %p377, %s27, 3
        %s379 = smul.addr %s378, 16
        %s380 = smul.addr %s379, 4
        %s381 = scalar_lea.vmem %s3, %s380
        %p382 = scmp.lt.s32.totalorder %s27, 3
        %s383 = scalar_select %p382, %s27, 3
        %s384 = scalar_lea.vmem %s4, %s383
        %p385 = scmp.lt.s32.totalorder %s27, 3
        %s386 = scalar_select %p385, %s27, 3
        %s387 = smul.addr %s386, 8
        %s388 = smul.addr %s387, 8
        %s389 = scalar_lea.vmem %s5, %s388
        %p390 = scmp.lt.s32.totalorder %s27, 3
        %s391 = scalar_select %p390, %s27, 3
        %s392 = smul.addr %s391, 4
        %s393 = smul.addr %s392, 4
        %s394 = scalar_lea.vmem %s6, %s393
        %s395 = smul.u32 8, %s26
        %p397 = scmp.eq.s32.totalorder %s27, 0
        // Predicated region
        $region53: #{tpu_custom_call.1} parent=51 // pred_check
          %p398 = pneg %p397
        $region54: #{tpu_custom_call.1} parent=51 // pred_check_branch
          %400 = sbr.rel (%p398) target = $region56
        $region55: #{tpu_custom_call.1} parent=51 // pred_region
          %v401 = vld [vmem:[%s375] sm:$0xff]
          %v402 = vld [vmem:[%s375 + $0x8] sm:$0xff]
          %v403 = vld [vmem:[%s375 + $0x10] sm:$0xff]
          %v404 = vld [vmem:[%s375 + $0x18] sm:$0xff]
          %v405 = vld [vmem:[%s375 + $0x20] sm:$0xff]
          %v406 = vld [vmem:[%s375 + $0x28] sm:$0xff]
          %v407 = vld [vmem:[%s375 + $0x30] sm:$0xff]
          %v408 = vld [vmem:[%s375 + $0x38] sm:$0xff]
          %409 = vadd.xlane.f32.xlu0 %v401
          %v410 = vpop.xlane.xlu0 %409
          %411 = vadd.xlane.f32.xlu0 %v402
          %v412 = vpop.xlane.xlu0 %411
          %413 = vadd.xlane.f32.xlu0 %v403
          %v414 = vpop.xlane.xlu0 %413
          %415 = vadd.xlane.f32.xlu0 %v404
          %v416 = vpop.xlane.xlu0 %415
          %417 = vadd.xlane.f32.xlu0 %v405
          %v418 = vpop.xlane.xlu0 %417
          %419 = vadd.xlane.f32.xlu0 %v406
          %v420 = vpop.xlane.xlu0 %419
          %421 = vadd.xlane.f32.xlu0 %v407
          %v422 = vpop.xlane.xlu0 %421
          %423 = vadd.xlane.f32.xlu0 %v408
          %v424 = vpop.xlane.xlu0 %423
          %v425 = vrcp.pop 128.0
          %v426 = vmul.f32 %v410, %v425
          %v427 = vmul.f32 %v412, %v425
          %v428 = vmul.f32 %v414, %v425
          %v429 = vmul.f32 %v416, %v425
          %v430 = vmul.f32 %v418, %v425
          %v431 = vmul.f32 %v420, %v425
          %v432 = vmul.f32 %v422, %v425
          %v433 = vmul.f32 %v424, %v425
          %v434 = vsub.f32 %v401, %v426
          %v435 = vsub.f32 %v402, %v427
          %v436 = vsub.f32 %v403, %v428
          %v437 = vsub.f32 %v404, %v429
          %v438 = vsub.f32 %v405, %v430
          %v439 = vsub.f32 %v406, %v431
          %v440 = vsub.f32 %v407, %v432
          %v441 = vsub.f32 %v408, %v433
          %v442 = vmul.f32 %v434, %v434
          %v443 = vmul.f32 %v435, %v435
          %v444 = vmul.f32 %v436, %v436
          %v445 = vmul.f32 %v437, %v437
          %v446 = vmul.f32 %v438, %v438
          %v447 = vmul.f32 %v439, %v439
          %v448 = vmul.f32 %v440, %v440
          %v449 = vmul.f32 %v441, %v441
          %450 = vadd.xlane.f32.xlu0 %v442
          %v451 = vpop.xlane.xlu0 %450
          %452 = vadd.xlane.f32.xlu0 %v443
          %v453 = vpop.xlane.xlu0 %452
          %454 = vadd.xlane.f32.xlu0 %v444
          %v455 = vpop.xlane.xlu0 %454
          %456 = vadd.xlane.f32.xlu0 %v445
          %v457 = vpop.xlane.xlu0 %456
          %458 = vadd.xlane.f32.xlu0 %v446
          %v459 = vpop.xlane.xlu0 %458
          %460 = vadd.xlane.f32.xlu0 %v447
          %v461 = vpop.xlane.xlu0 %460
          %462 = vadd.xlane.f32.xlu0 %v448
          %v463 = vpop.xlane.xlu0 %462
          %464 = vadd.xlane.f32.xlu0 %v449
          %v465 = vpop.xlane.xlu0 %464
          %v466 = vmul.f32 %v451, %v425
          %v467 = vmul.f32 %v453, %v425
          %v468 = vmul.f32 %v455, %v425
          %v469 = vmul.f32 %v457, %v425
          %v470 = vmul.f32 %v459, %v425
          %v471 = vmul.f32 %v461, %v425
          %v472 = vmul.f32 %v463, %v425
          %v473 = vmul.f32 %v465, %v425
          %v474 = vadd.f32 %v466, 1e-05
          %v475 = vadd.f32 %v467, 1e-05
          %v476 = vadd.f32 %v468, 1e-05
          %v477 = vadd.f32 %v469, 1e-05
          %v478 = vadd.f32 %v470, 1e-05
          %v479 = vadd.f32 %v471, 1e-05
          %v480 = vadd.f32 %v472, 1e-05
          %v481 = vadd.f32 %v473, 1e-05
          %v482 = vrsqrt.pop %v474
          %v483 = vrsqrt.pop %v475
          %v484 = vrsqrt.pop %v476
          %v485 = vrsqrt.pop %v477
          %v486 = vrsqrt.pop %v478
          %v487 = vrsqrt.pop %v479
          %v488 = vrsqrt.pop %v480
          %v489 = vrsqrt.pop %v481
          %v490 = vmul.f32 %v434, %v482
          %v491 = vmul.f32 %v435, %v483
          %v492 = vmul.f32 %v436, %v484
          %v493 = vmul.f32 %v437, %v485
          %v494 = vmul.f32 %v438, %v486
          %v495 = vmul.f32 %v439, %v487
          %v496 = vmul.f32 %v440, %v488
          %v497 = vmul.f32 %v441, %v489
          %v498 = vld [vmem:[%s1] sm:$0x1]
          %v500 = vlaneseq
          %v501 = vshrl.u32 %v500, 7
          %v502 = vsub.s32 0, %v501
          %v503 = vrot.slane %v498, %v502
          %v505 = vmul.f32 %v490, %v503
          %v506 = vmul.f32 %v491, %v503
          %v507 = vmul.f32 %v492, %v503
          %v508 = vmul.f32 %v493, %v503
          %v509 = vmul.f32 %v494, %v503
          %v510 = vmul.f32 %v495, %v503
          %v511 = vmul.f32 %v496, %v503
          %v512 = vmul.f32 %v497, %v503
          %v513 = vld [vmem:[%s2] sm:$0x1]
          %v515 = vlaneseq
          %v516 = vshrl.u32 %v515, 7
          %v517 = vsub.s32 0, %v516
          %v518 = vrot.slane %v513, %v517
          %v520 = vadd.f32 %v505, %v518
          %v521 = vadd.f32 %v506, %v518
          %v522 = vadd.f32 %v507, %v518
          %v523 = vadd.f32 %v508, %v518
          %v524 = vadd.f32 %v509, %v518
          %v525 = vadd.f32 %v510, %v518
          %v526 = vadd.f32 %v511, %v518
          %v527 = vadd.f32 %v512, %v518
          %v528 = vpack.c.bf16 %v521, %v520
          %v529 = vpack.c.bf16 %v523, %v522
          %v530 = vpack.c.bf16 %v525, %v524
          %v531 = vpack.c.bf16 %v527, %v526
          %532 = vst [vmem:[#allocation2] sm:$0xff] %v528
          %533 = vst [vmem:[#allocation2 + $0x8] sm:$0xff] %v529
          %534 = vst [vmem:[#allocation2 + $0x10] sm:$0xff] %v530
          %535 = vst [vmem:[#allocation2 + $0x18] sm:$0xff] %v531
          %v536 = vld [vmem:[%s7] sm:$0x1]
          %v538 = vlaneseq
          %v539 = vshrl.u32 %v538, 7
          %v540 = vsub.s32 0, %v539
          %v541 = vrot.slane %v536, %v540
          %543 = vst [vmem:[%s369] sm:$0xff] %v541
          %544 = vst [vmem:[%s369 + $0x8] sm:$0xff] %v541
          %545 = vst [vmem:[%s369 + $0x10] sm:$0xff] %v541
          %546 = vst [vmem:[%s369 + $0x18] sm:$0xff] %v541
          %547 = vst [vmem:[%s369 + $0x20] sm:$0xff] %v541
          %548 = vst [vmem:[%s369 + $0x28] sm:$0xff] %v541
          %549 = vst [vmem:[%s369 + $0x30] sm:$0xff] %v541
          %550 = vst [vmem:[%s369 + $0x38] sm:$0xff] %v541
        $region56: #{tpu_custom_call.1} parent=51 // pred_fallthru
          _
        %v551 = vld [vmem:[#allocation2] sm:$0xff]
        %v552 = vld [vmem:[#allocation2 + $0x8] sm:$0xff]
        %v553 = vld [vmem:[#allocation2 + $0x10] sm:$0xff]
        %v554 = vld [vmem:[#allocation2 + $0x18] sm:$0xff]
        %v555 = vld [vmem:[%s381] sm:$0xf]
        %v556 = vld [vmem:[%s381 + $0x4] sm:$0xf]
        %v557 = vld [vmem:[%s381 + $0x8] sm:$0xf]
        %v558 = vld [vmem:[%s381 + $0xc] sm:$0xf]
        %v559 = vld [vmem:[%s381 + $0x10] sm:$0xf]
        %v560 = vld [vmem:[%s381 + $0x14] sm:$0xf]
        %v561 = vld [vmem:[%s381 + $0x18] sm:$0xf]
        %v562 = vld [vmem:[%s381 + $0x1c] sm:$0xf]
        %v563 = vld [vmem:[%s381 + $0x20] sm:$0xf]
        %v564 = vld [vmem:[%s381 + $0x24] sm:$0xf]
        %v565 = vld [vmem:[%s381 + $0x28] sm:$0xf]
        %v566 = vld [vmem:[%s381 + $0x2c] sm:$0xf]
        %v567 = vld [vmem:[%s381 + $0x30] sm:$0xf]
        %v568 = vld [vmem:[%s381 + $0x34] sm:$0xf]
        %v569 = vld [vmem:[%s381 + $0x38] sm:$0xf]
        %v570 = vld [vmem:[%s381 + $0x3c] sm:$0xf]
        %v571 = vld [vmem:[%s384] sm:$0x1]
        %v573 = vlaneseq
        %v574 = vshrl.u32 %v573, 7
        %v575 = vsub.s32 0, %v574
        %v576 = vrot.slane %v571, %v575
        %v594 = vunpack.c.l.b16 %v555
        %v595 = vunpack.c.l.b16 %v556
        %v596 = vunpack.c.l.b16 %v557
        %v597 = vunpack.c.l.b16 %v558
        %v598 = vunpack.c.l.b16 %v559
        %v599 = vunpack.c.l.b16 %v560
        %v600 = vunpack.c.l.b16 %v561
        %v601 = vunpack.c.l.b16 %v562
        %v602 = vunpack.c.l.b16 %v563
        %v603 = vunpack.c.l.b16 %v564
        %v604 = vunpack.c.l.b16 %v565
        %v605 = vunpack.c.l.b16 %v566
        %v606 = vunpack.c.l.b16 %v567
        %v607 = vunpack.c.l.b16 %v568
        %v608 = vunpack.c.l.b16 %v569
        %v609 = vunpack.c.l.b16 %v570
        %v610 = vpack.c.b16 %v595, %v594
        %v611 = vpack.c.b16 %v597, %v596
        %v612 = vpack.c.b16 %v599, %v598
        %v613 = vpack.c.b16 %v601, %v600
        %v614 = vpack.c.b16 %v603, %v602
        %v615 = vpack.c.b16 %v605, %v604
        %v616 = vpack.c.b16 %v607, %v606
        %v617 = vpack.c.b16 %v609, %v608
        %626 = vmatprep.subr.bf16.mxu0 0
        %627 = vmatpush1.bf16.msra.mxu0 %v610
        %628 = vmatprep.subr.bf16.mxu0 0
        %629 = vmatpush1.bf16.msra.mxu0 %v611
        %630 = vmatprep.subr.bf16.mxu0 0
        %631 = vmatpush1.bf16.msra.mxu0 %v612
        %632 = vmatprep.subr.bf16.mxu0 0
        %633 = vmatpush1.bf16.msra.mxu0 %v613
        %634 = vmatprep.subr.bf16.mxu0 0
        %635 = vmatpush1.bf16.msra.mxu0 %v614
        %636 = vmatprep.subr.bf16.mxu0 0
        %637 = vmatpush1.bf16.msra.mxu0 %v615
        %638 = vmatprep.subr.bf16.mxu0 0
        %639 = vmatpush1.bf16.msra.mxu0 %v616
        %640 = vmatprep.subr.bf16.mxu0 0
        %641 = vmatpush1.bf16.msra.mxu0 %v617
        %642 = vmatprep.subr.bf16.mxu0 0
        %643 = vmatpush1.bf16.msra.mxu0 0
        %644 = vmatprep.subr.bf16.mxu0 0
        %645 = vmatpush1.bf16.msra.mxu0 0
        %646 = vmatprep.subr.bf16.mxu0 0
        %647 = vmatpush1.bf16.msra.mxu0 0
        %648 = vmatprep.subr.bf16.mxu0 0
        %649 = vmatpush1.bf16.msra.mxu0 0
        %650 = vmatprep.subr.bf16.mxu0 0
        %651 = vmatpush1.bf16.msra.mxu0 0
        %652 = vmatprep.subr.bf16.mxu0 0
        %653 = vmatpush1.bf16.msra.mxu0 0
        %654 = vmatprep.subr.bf16.mxu0 0
        %655 = vmatpush1.bf16.msra.mxu0 0
        %656 = vmatprep.subr.bf16.mxu0 0
        %657 = vmatpush1.bf16.msra.mxu0 0
        %658 = vmatprep.mubr.bf16.mxu0 0
        %659 = vmatmul.mubr.bf16.gmra.mrb[0].mxu0 %v551
        %v660 = vpop.f32.mrb[0].mxu0
        %v661 = vadd.f32 %v576, %v660
        %v662 = vpop.f32.mrb[0].mxu0
        %v663 = vpop.f32.mrb[0].mxu0
        %v664 = vadd.f32 %v576, %v663
        %v665 = vpop.f32.mrb[0].mxu0
        %666 = vmatprep.mubr.bf16.mxu0 0
        %667 = vmatmul.mubr.bf16.gmra.mrb[0].mxu0 %v552
        %v668 = vpop.f32.mrb[0].mxu0
        %v669 = vadd.f32 %v576, %v668
        %v670 = vpop.f32.mrb[0].mxu0
        %v671 = vpop.f32.mrb[0].mxu0
        %v672 = vadd.f32 %v576, %v671
        %v673 = vpop.f32.mrb[0].mxu0
        %674 = vmatprep.mubr.bf16.mxu0 0
        %675 = vmatmul.mubr.bf16.gmra.mrb[0].mxu0 %v553
        %v676 = vpop.f32.mrb[0].mxu0
        %v677 = vadd.f32 %v576, %v676
        %v678 = vpop.f32.mrb[0].mxu0
        %v679 = vpop.f32.mrb[0].mxu0
        %v680 = vadd.f32 %v576, %v679
        %v681 = vpop.f32.mrb[0].mxu0
        %682 = vmatprep.mubr.bf16.mxu0 0
        %683 = vmatmul.mubr.bf16.gmra.mrb[0].mxu0 %v554
        %v684 = vpop.f32.mrb[0].mxu0
        %v685 = vadd.f32 %v576, %v684
        %v686 = vpop.f32.mrb[0].mxu0
        %v687 = vpop.f32.mrb[0].mxu0
        %v688 = vadd.f32 %v576, %v687
        %v689 = vpop.f32.mrb[0].mxu0
        %690 = vdwg.mxu0
        %v691 = vpack.c.bf16 %v664, %v661
        %v692 = vpack.c.bf16 %v672, %v669
        %v693 = vpack.c.bf16 %v680, %v677
        %v694 = vpack.c.bf16 %v688, %v685
        %v695 = vld [vmem:[%s389] sm:$0xff]
        %v696 = vld [vmem:[%s389 + $0x8] sm:$0xff]
        %v697 = vld [vmem:[%s389 + $0x10] sm:$0xff]
        %v698 = vld [vmem:[%s389 + $0x18] sm:$0xff]
        %v699 = vld [vmem:[%s389 + $0x20] sm:$0xff]
        %v700 = vld [vmem:[%s389 + $0x28] sm:$0xff]
        %v701 = vld [vmem:[%s389 + $0x30] sm:$0xff]
        %v702 = vld [vmem:[%s389 + $0x38] sm:$0xff]
        %704 = vrot.lane.b32.xlu0 %v691, 96
        %v705 = vpop.permute.xlu0 %704
        %vm706 = vcmask 261120
        %v708 = vsel %vm706, %v691, 0
        %v711 = vsel %vm706, %v705, 0
        %713 = vmatprep.subr.bf16.mxu0 0
        %714 = vmatpush1.bf16.xpose.msra.mxu0 %v711
        %715 = vmatprep.subr.bf16.mxu0 0
        %716 = vmatpush1.bf16.xpose.msra.mxu0 0
        %717 = vmatprep.subr.bf16.mxu0 0
        %718 = vmatpush1.bf16.xpose.msra.mxu0 0
        %719 = vmatprep.subr.bf16.mxu0 0
        %720 = vmatpush1.bf16.xpose.msra.mxu0 0
        %721 = vmatprep.subr.bf16.mxu0 0
        %722 = vmatpush1.bf16.xpose.msra.mxu0 0
        %723 = vmatprep.subr.bf16.mxu0 0
        %724 = vmatpush1.bf16.xpose.msra.mxu0 0
        %725 = vmatprep.subr.bf16.mxu0 0
        %726 = vmatpush1.bf16.xpose.msra.mxu0 0
        %727 = vmatprep.subr.bf16.mxu0 0
        %728 = vmatpush1.bf16.xpose.msra.mxu0 0
        %729 = vmatprep.subr.bf16.mxu0 0
        %730 = vmatpush1.bf16.xpose.msra.mxu0 0
        %731 = vmatprep.subr.bf16.mxu0 0
        %732 = vmatpush1.bf16.xpose.msra.mxu0 0
        %733 = vmatprep.subr.bf16.mxu0 0
        %734 = vmatpush1.bf16.xpose.msra.mxu0 0
        %735 = vmatprep.subr.bf16.mxu0 0
        %736 = vmatpush1.bf16.xpose.msra.mxu0 0
        %737 = vmatprep.subr.bf16.mxu0 0
        %738 = vmatpush1.bf16.xpose.msra.mxu0 0
        %739 = vmatprep.subr.bf16.mxu0 0
        %740 = vmatpush1.bf16.xpose.msra.mxu0 0
        %741 = vmatprep.subr.bf16.mxu0 0
        %742 = vmatpush1.bf16.xpose.msra.mxu0 0
        %743 = vmatprep.subr.bf16.mxu0 0
        %744 = vmatpush1.bf16.xpose.msra.mxu0 0
        %745 = vmatprep.mubr.bf16.mxu0 0
        %746 = vmatmul.mubr.bf16.gmra.mrb[0].mxu0 %v708
        %v747 = vpop.f32.mrb[0].mxu0
        %v748 = vadd.f32 %v695, %v747
        %v749 = vpop.f32.mrb[0].mxu0
        %v750 = vpop.f32.mrb[0].mxu0
        %v751 = vadd.f32 %v696, %v750
        %v752 = vpop.f32.mrb[0].mxu0
        %753 = vdwg.mxu0
        %755 = vrot.lane.b32.xlu0 %v692, 96
        %v756 = vpop.permute.xlu0 %755
        %v758 = vsel %vm706, %v692, 0
        %v761 = vsel %vm706, %v756, 0
        %763 = vmatprep.subr.bf16.mxu0 0
        %764 = vmatpush1.bf16.xpose.msra.mxu0 %v761
        %765 = vmatprep.subr.bf16.mxu0 0
        %766 = vmatpush1.bf16.xpose.msra.mxu0 0
        %767 = vmatprep.subr.bf16.mxu0 0
        %768 = vmatpush1.bf16.xpose.msra.mxu0 0
        %769 = vmatprep.subr.bf16.mxu0 0
        %770 = vmatpush1.bf16.xpose.msra.mxu0 0
        %771 = vmatprep.subr.bf16.mxu0 0
        %772 = vmatpush1.bf16.xpose.msra.mxu0 0
        %773 = vmatprep.subr.bf16.mxu0 0
        %774 = vmatpush1.bf16.xpose.msra.mxu0 0
        %775 = vmatprep.subr.bf16.mxu0 0
        %776 = vmatpush1.bf16.xpose.msra.mxu0 0
        %777 = vmatprep.subr.bf16.mxu0 0
        %778 = vmatpush1.bf16.xpose.msra.mxu0 0
        %779 = vmatprep.subr.bf16.mxu0 0
        %780 = vmatpush1.bf16.xpose.msra.mxu0 0
        %781 = vmatprep.subr.bf16.mxu0 0
        %782 = vmatpush1.bf16.xpose.msra.mxu0 0
        %783 = vmatprep.subr.bf16.mxu0 0
        %784 = vmatpush1.bf16.xpose.msra.mxu0 0
        %785 = vmatprep.subr.bf16.mxu0 0
        %786 = vmatpush1.bf16.xpose.msra.mxu0 0
        %787 = vmatprep.subr.bf16.mxu0 0
        %788 = vmatpush1.bf16.xpose.msra.mxu0 0
        %789 = vmatprep.subr.bf16.mxu0 0
        %790 = vmatpush1.bf16.xpose.msra.mxu0 0
        %791 = vmatprep.subr.bf16.mxu0 0
        %792 = vmatpush1.bf16.xpose.msra.mxu0 0
        %793 = vmatprep.subr.bf16.mxu0 0
        %794 = vmatpush1.bf16.xpose.msra.mxu0 0
        %795 = vmatprep.mubr.bf16.mxu0 0
        %796 = vmatmul.mubr.bf16.gmra.mrb[0].mxu0 %v758
        %v797 = vpop.f32.mrb[0].mxu0
        %v798 = vadd.f32 %v697, %v797
        %v799 = vpop.f32.mrb[0].mxu0
        %v800 = vpop.f32.mrb[0].mxu0
        %v801 = vadd.f32 %v698, %v800
        %v802 = vpop.f32.mrb[0].mxu0
        %803 = vdwg.mxu0
        %805 = vrot.lane.b32.xlu0 %v693, 96
        %v806 = vpop.permute.xlu0 %805
        %v808 = vsel %vm706, %v693, 0
        %v811 = vsel %vm706, %v806, 0
        %813 = vmatprep.subr.bf16.mxu0 0
        %814 = vmatpush1.bf16.xpose.msra.mxu0 %v811
        %815 = vmatprep.subr.bf16.mxu0 0
        %816 = vmatpush1.bf16.xpose.msra.mxu0 0
        %817 = vmatprep.subr.bf16.mxu0 0
        %818 = vmatpush1.bf16.xpose.msra.mxu0 0
        %819 = vmatprep.subr.bf16.mxu0 0
        %820 = vmatpush1.bf16.xpose.msra.mxu0 0
        %821 = vmatprep.subr.bf16.mxu0 0
        %822 = vmatpush1.bf16.xpose.msra.mxu0 0
        %823 = vmatprep.subr.bf16.mxu0 0
        %824 = vmatpush1.bf16.xpose.msra.mxu0 0
        %825 = vmatprep.subr.bf16.mxu0 0
        %826 = vmatpush1.bf16.xpose.msra.mxu0 0
        %827 = vmatprep.subr.bf16.mxu0 0
        %828 = vmatpush1.bf16.xpose.msra.mxu0 0
        %829 = vmatprep.subr.bf16.mxu0 0
        %830 = vmatpush1.bf16.xpose.msra.mxu0 0
        %831 = vmatprep.subr.bf16.mxu0 0
        %832 = vmatpush1.bf16.xpose.msra.mxu0 0
        %833 = vmatprep.subr.bf16.mxu0 0
        %834 = vmatpush1.bf16.xpose.msra.mxu0 0
        %835 = vmatprep.subr.bf16.mxu0 0
        %836 = vmatpush1.bf16.xpose.msra.mxu0 0
        %837 = vmatprep.subr.bf16.mxu0 0
        %838 = vmatpush1.bf16.xpose.msra.mxu0 0
        %839 = vmatprep.subr.bf16.mxu0 0
        %840 = vmatpush1.bf16.xpose.msra.mxu0 0
        %841 = vmatprep.subr.bf16.mxu0 0
        %842 = vmatpush1.bf16.xpose.msra.mxu0 0
        %843 = vmatprep.subr.bf16.mxu0 0
        %844 = vmatpush1.bf16.xpose.msra.mxu0 0
        %845 = vmatprep.mubr.bf16.mxu0 0
        %846 = vmatmul.mubr.bf16.gmra.mrb[0].mxu0 %v808
        %v847 = vpop.f32.mrb[0].mxu0
        %v848 = vadd.f32 %v699, %v847
        %v849 = vpop.f32.mrb[0].mxu0
        %v850 = vpop.f32.mrb[0].mxu0
        %v851 = vadd.f32 %v700, %v850
        %v852 = vpop.f32.mrb[0].mxu0
        %853 = vdwg.mxu0
        %855 = vrot.lane.b32.xlu0 %v694, 96
        %v856 = vpop.permute.xlu0 %855
        %v858 = vsel %vm706, %v694, 0
        %v861 = vsel %vm706, %v856, 0
        %863 = vmatprep.subr.bf16.mxu0 0
        %864 = vmatpush1.bf16.xpose.msra.mxu0 %v861
        %865 = vmatprep.subr.bf16.mxu0 0
        %866 = vmatpush1.bf16.xpose.msra.mxu0 0
        %867 = vmatprep.subr.bf16.mxu0 0
        %868 = vmatpush1.bf16.xpose.msra.mxu0 0
        %869 = vmatprep.subr.bf16.mxu0 0
        %870 = vmatpush1.bf16.xpose.msra.mxu0 0
        %871 = vmatprep.subr.bf16.mxu0 0
        %872 = vmatpush1.bf16.xpose.msra.mxu0 0
        %873 = vmatprep.subr.bf16.mxu0 0
        %874 = vmatpush1.bf16.xpose.msra.mxu0 0
        %875 = vmatprep.subr.bf16.mxu0 0
        %876 = vmatpush1.bf16.xpose.msra.mxu0 0
        %877 = vmatprep.subr.bf16.mxu0 0
        %878 = vmatpush1.bf16.xpose.msra.mxu0 0
        %879 = vmatprep.subr.bf16.mxu0 0
        %880 = vmatpush1.bf16.xpose.msra.mxu0 0
        %881 = vmatprep.subr.bf16.mxu0 0
        %882 = vmatpush1.bf16.xpose.msra.mxu0 0
        %883 = vmatprep.subr.bf16.mxu0 0
        %884 = vmatpush1.bf16.xpose.msra.mxu0 0
        %885 = vmatprep.subr.bf16.mxu0 0
        %886 = vmatpush1.bf16.xpose.msra.mxu0 0
        %887 = vmatprep.subr.bf16.mxu0 0
        %888 = vmatpush1.bf16.xpose.msra.mxu0 0
        %889 = vmatprep.subr.bf16.mxu0 0
        %890 = vmatpush1.bf16.xpose.msra.mxu0 0
        %891 = vmatprep.subr.bf16.mxu0 0
        %892 = vmatpush1.bf16.xpose.msra.mxu0 0
        %893 = vmatprep.subr.bf16.mxu0 0
        %894 = vmatpush1.bf16.xpose.msra.mxu0 0
        %895 = vmatprep.mubr.bf16.mxu0 0
        %896 = vmatmul.mubr.bf16.gmra.mrb[0].mxu0 %v858
        %v897 = vpop.f32.mrb[0].mxu0
        %v898 = vadd.f32 %v701, %v897
        %v899 = vpop.f32.mrb[0].mxu0
        %v900 = vpop.f32.mrb[0].mxu0
        %v901 = vadd.f32 %v702, %v900
        %v902 = vpop.f32.mrb[0].mxu0
        %903 = vdwg.mxu0
        %vm904 = vcmask 130048
        %v905 = vsel %vm904, %v748, -inf
        %906 = vmax.xlane.f32.xlu0 %v905
        %v907 = vpop.xlane.xlu0 %906
        %v908 = vsel %vm904, %v751, -inf
        %909 = vmax.xlane.f32.xlu0 %v908
        %v910 = vpop.xlane.xlu0 %909
        %v911 = vsel %vm904, %v798, -inf
        %912 = vmax.xlane.f32.xlu0 %v911
        %v913 = vpop.xlane.xlu0 %912
        %v914 = vsel %vm904, %v801, -inf
        %915 = vmax.xlane.f32.xlu0 %v914
        %v916 = vpop.xlane.xlu0 %915
        %v917 = vsel %vm904, %v848, -inf
        %918 = vmax.xlane.f32.xlu0 %v917
        %v919 = vpop.xlane.xlu0 %918
        %v920 = vsel %vm904, %v851, -inf
        %921 = vmax.xlane.f32.xlu0 %v920
        %v922 = vpop.xlane.xlu0 %921
        %v923 = vsel %vm904, %v898, -inf
        %924 = vmax.xlane.f32.xlu0 %v923
        %v925 = vpop.xlane.xlu0 %924
        %v926 = vsel %vm904, %v901, -inf
        %927 = vmax.xlane.f32.xlu0 %v926
        %v928 = vpop.xlane.xlu0 %927
        %v929 = vsub.f32 %v748, %v907
        %v930 = vsub.f32 %v751, %v910
        %v931 = vsub.f32 %v798, %v913
        %v932 = vsub.f32 %v801, %v916
        %v933 = vsub.f32 %v848, %v919
        %v934 = vsub.f32 %v851, %v922
        %v935 = vsub.f32 %v898, %v925
        %v936 = vsub.f32 %v901, %v928
        %v937 = vmul.f32 %v929, 1.442695
        %v938 = vpow.pop %v937
        %v939 = vmul.f32 %v930, 1.442695
        %v940 = vpow.pop %v939
        %v941 = vmul.f32 %v931, 1.442695
        %v942 = vpow.pop %v941
        %v943 = vmul.f32 %v932, 1.442695
        %v944 = vpow.pop %v943
        %v945 = vmul.f32 %v933, 1.442695
        %v946 = vpow.pop %v945
        %v947 = vmul.f32 %v934, 1.442695
        %v948 = vpow.pop %v947
        %v949 = vmul.f32 %v935, 1.442695
        %v950 = vpow.pop %v949
        %v951 = vmul.f32 %v936, 1.442695
        %v952 = vpow.pop %v951
        %v953 = vsel %vm904, %v938, 0.0
        %954 = vadd.xlane.f32.xlu0 %v953
        %v955 = vpop.xlane.xlu0 %954
        %v956 = vsel %vm904, %v940, 0.0
        %957 = vadd.xlane.f32.xlu0 %v956
        %v958 = vpop.xlane.xlu0 %957
        %v959 = vsel %vm904, %v942, 0.0
        %960 = vadd.xlane.f32.xlu0 %v959
        %v961 = vpop.xlane.xlu0 %960
        %v962 = vsel %vm904, %v944, 0.0
        %963 = vadd.xlane.f32.xlu0 %v962
        %v964 = vpop.xlane.xlu0 %963
        %v965 = vsel %vm904, %v946, 0.0
        %966 = vadd.xlane.f32.xlu0 %v965
        %v967 = vpop.xlane.xlu0 %966
        %v968 = vsel %vm904, %v948, 0.0
        %969 = vadd.xlane.f32.xlu0 %v968
        %v970 = vpop.xlane.xlu0 %969
        %v971 = vsel %vm904, %v950, 0.0
        %972 = vadd.xlane.f32.xlu0 %v971
        %v973 = vpop.xlane.xlu0 %972
        %v974 = vsel %vm904, %v952, 0.0
        %975 = vadd.xlane.f32.xlu0 %v974
        %v976 = vpop.xlane.xlu0 %975
        %v977 = vrcp.pop %v955
        %v978 = vrcp.pop %v958
        %v979 = vrcp.pop %v961
        %v980 = vrcp.pop %v964
        %v981 = vrcp.pop %v967
        %v982 = vrcp.pop %v970
        %v983 = vrcp.pop %v973
        %v984 = vrcp.pop %v976
        %v985 = vmul.f32 %v938, %v977
        %v986 = vmul.f32 %v940, %v978
        %v987 = vmul.f32 %v942, %v979
        %v988 = vmul.f32 %v944, %v980
        %v989 = vmul.f32 %v946, %v981
        %v990 = vmul.f32 %v948, %v982
        %v991 = vmul.f32 %v950, %v983
        %v992 = vmul.f32 %v952, %v984
        %v993 = vpack.c.bf16 %v986, %v985
        %v994 = vpack.c.bf16 %v988, %v987
        %v995 = vpack.c.bf16 %v990, %v989
        %v996 = vpack.c.bf16 %v992, %v991
        %997 = vrot.lane.b32.xlu0 %v691, 64
        %v998 = vpop.permute.xlu0 %997
        %v1001 = vsel %vm904, %v993, 0
        %1003 = vmatprep.subr.bf16.mxu0 0
        %1004 = vmatpush1.bf16.msra.mxu0 %v998
        %1005 = vmatprep.subr.bf16.mxu0 0
        %1006 = vmatpush1.bf16.msra.mxu0 0
        %1007 = vmatprep.subr.bf16.mxu0 0
        %1008 = vmatpush1.bf16.msra.mxu0 0
        %1009 = vmatprep.subr.bf16.mxu0 0
        %1010 = vmatpush1.bf16.msra.mxu0 0
        %1011 = vmatprep.subr.bf16.mxu0 0
        %1012 = vmatpush1.bf16.msra.mxu0 0
        %1013 = vmatprep.subr.bf16.mxu0 0
        %1014 = vmatpush1.bf16.msra.mxu0 0
        %1015 = vmatprep.subr.bf16.mxu0 0
        %1016 = vmatpush1.bf16.msra.mxu0 0
        %1017 = vmatprep.subr.bf16.mxu0 0
        %1018 = vmatpush1.bf16.msra.mxu0 0
        %1019 = vmatprep.subr.bf16.mxu0 0
        %1020 = vmatpush1.bf16.msra.mxu0 0
        %1021 = vmatprep.subr.bf16.mxu0 0
        %1022 = vmatpush1.bf16.msra.mxu0 0
        %1023 = vmatprep.subr.bf16.mxu0 0
        %1024 = vmatpush1.bf16.msra.mxu0 0
        %1025 = vmatprep.subr.bf16.mxu0 0
        %1026 = vmatpush1.bf16.msra.mxu0 0
        %1027 = vmatprep.subr.bf16.mxu0 0
        %1028 = vmatpush1.bf16.msra.mxu0 0
        %1029 = vmatprep.subr.bf16.mxu0 0
        %1030 = vmatpush1.bf16.msra.mxu0 0
        %1031 = vmatprep.subr.bf16.mxu0 0
        %1032 = vmatpush1.bf16.msra.mxu0 0
        %1033 = vmatprep.subr.bf16.mxu0 0
        %1034 = vmatpush1.bf16.msra.mxu0 0
        %1035 = vmatprep.mubr.bf16.mxu0 0
        %1036 = vmatmul.mubr.bf16.gmra.mrb[0].mxu0 %v1001
        %v1037 = vpop.f32.mrb[0].mxu0
        %v1038 = vadd.f32 0.0, %v1037
        %v1039 = vpop.f32.mrb[0].mxu0
        %v1040 = vpop.f32.mrb[0].mxu0
        %v1041 = vadd.f32 0.0, %v1040
        %v1042 = vpop.f32.mrb[0].mxu0
        %1043 = vdwg.mxu0
        %1044 = vrot.lane.b32.xlu0 %v692, 64
        %v1045 = vpop.permute.xlu0 %1044
        %v1048 = vsel %vm904, %v994, 0
        %1050 = vmatprep.subr.bf16.mxu0 0
        %1051 = vmatpush1.bf16.msra.mxu0 %v1045
        %1052 = vmatprep.subr.bf16.mxu0 0
        %1053 = vmatpush1.bf16.msra.mxu0 0
        %1054 = vmatprep.subr.bf16.mxu0 0
        %1055 = vmatpush1.bf16.msra.mxu0 0
        %1056 = vmatprep.subr.bf16.mxu0 0
        %1057 = vmatpush1.bf16.msra.mxu0 0
        %1058 = vmatprep.subr.bf16.mxu0 0
        %1059 = vmatpush1.bf16.msra.mxu0 0
        %1060 = vmatprep.subr.bf16.mxu0 0
        %1061 = vmatpush1.bf16.msra.mxu0 0
        %1062 = vmatprep.subr.bf16.mxu0 0
        %1063 = vmatpush1.bf16.msra.mxu0 0
        %1064 = vmatprep.subr.bf16.mxu0 0
        %1065 = vmatpush1.bf16.msra.mxu0 0
        %1066 = vmatprep.subr.bf16.mxu0 0
        %1067 = vmatpush1.bf16.msra.mxu0 0
        %1068 = vmatprep.subr.bf16.mxu0 0
        %1069 = vmatpush1.bf16.msra.mxu0 0
        %1070 = vmatprep.subr.bf16.mxu0 0
        %1071 = vmatpush1.bf16.msra.mxu0 0
        %1072 = vmatprep.subr.bf16.mxu0 0
        %1073 = vmatpush1.bf16.msra.mxu0 0
        %1074 = vmatprep.subr.bf16.mxu0 0
        %1075 = vmatpush1.bf16.msra.mxu0 0
        %1076 = vmatprep.subr.bf16.mxu0 0
        %1077 = vmatpush1.bf16.msra.mxu0 0
        %1078 = vmatprep.subr.bf16.mxu0 0
        %1079 = vmatpush1.bf16.msra.mxu0 0
        %1080 = vmatprep.subr.bf16.mxu0 0
        %1081 = vmatpush1.bf16.msra.mxu0 0
        %1082 = vmatprep.mubr.bf16.mxu0 0
        %1083 = vmatmul.mubr.bf16.gmra.mrb[0].mxu0 %v1048
        %v1084 = vpop.f32.mrb[0].mxu0
        %v1085 = vadd.f32 0.0, %v1084
        %v1086 = vpop.f32.mrb[0].mxu0
        %v1087 = vpop.f32.mrb[0].mxu0
        %v1088 = vadd.f32 0.0, %v1087
        %v1089 = vpop.f32.mrb[0].mxu0
        %1090 = vdwg.mxu0
        %1091 = vrot.lane.b32.xlu0 %v693, 64
        %v1092 = vpop.permute.xlu0 %1091
        %v1095 = vsel %vm904, %v995, 0
        %1097 = vmatprep.subr.bf16.mxu0 0
        %1098 = vmatpush1.bf16.msra.mxu0 %v1092
        %1099 = vmatprep.subr.bf16.mxu0 0
        %1100 = vmatpush1.bf16.msra.mxu0 0
        %1101 = vmatprep.subr.bf16.mxu0 0
        %1102 = vmatpush1.bf16.msra.mxu0 0
        %1103 = vmatprep.subr.bf16.mxu0 0
        %1104 = vmatpush1.bf16.msra.mxu0 0
        %1105 = vmatprep.subr.bf16.mxu0 0
        %1106 = vmatpush1.bf16.msra.mxu0 0
        %1107 = vmatprep.subr.bf16.mxu0 0
        %1108 = vmatpush1.bf16.msra.mxu0 0
        %1109 = vmatprep.subr.bf16.mxu0 0
        %1110 = vmatpush1.bf16.msra.mxu0 0
        %1111 = vmatprep.subr.bf16.mxu0 0
        %1112 = vmatpush1.bf16.msra.mxu0 0
        %1113 = vmatprep.subr.bf16.mxu0 0
        %1114 = vmatpush1.bf16.msra.mxu0 0
        %1115 = vmatprep.subr.bf16.mxu0 0
        %1116 = vmatpush1.bf16.msra.mxu0 0
        %1117 = vmatprep.subr.bf16.mxu0 0
        %1118 = vmatpush1.bf16.msra.mxu0 0
        %1119 = vmatprep.subr.bf16.mxu0 0
        %1120 = vmatpush1.bf16.msra.mxu0 0
        %1121 = vmatprep.subr.bf16.mxu0 0
        %1122 = vmatpush1.bf16.msra.mxu0 0
        %1123 = vmatprep.subr.bf16.mxu0 0
        %1124 = vmatpush1.bf16.msra.mxu0 0
        %1125 = vmatprep.subr.bf16.mxu0 0
        %1126 = vmatpush1.bf16.msra.mxu0 0
        %1127 = vmatprep.subr.bf16.mxu0 0
        %1128 = vmatpush1.bf16.msra.mxu0 0
        %1129 = vmatprep.mubr.bf16.mxu0 0
        %1130 = vmatmul.mubr.bf16.gmra.mrb[0].mxu0 %v1095
        %v1131 = vpop.f32.mrb[0].mxu0
        %v1132 = vadd.f32 0.0, %v1131
        %v1133 = vpop.f32.mrb[0].mxu0
        %v1134 = vpop.f32.mrb[0].mxu0
        %v1135 = vadd.f32 0.0, %v1134
        %v1136 = vpop.f32.mrb[0].mxu0
        %1137 = vdwg.mxu0
        %1138 = vrot.lane.b32.xlu0 %v694, 64
        %v1139 = vpop.permute.xlu0 %1138
        %v1142 = vsel %vm904, %v996, 0
        %1144 = vmatprep.subr.bf16.mxu0 0
        %1145 = vmatpush1.bf16.msra.mxu0 %v1139
        %1146 = vmatprep.subr.bf16.mxu0 0
        %1147 = vmatpush1.bf16.msra.mxu0 0
        %1148 = vmatprep.subr.bf16.mxu0 0
        %1149 = vmatpush1.bf16.msra.mxu0 0
        %1150 = vmatprep.subr.bf16.mxu0 0
        %1151 = vmatpush1.bf16.msra.mxu0 0
        %1152 = vmatprep.subr.bf16.mxu0 0
        %1153 = vmatpush1.bf16.msra.mxu0 0
        %1154 = vmatprep.subr.bf16.mxu0 0
        %1155 = vmatpush1.bf16.msra.mxu0 0
        %1156 = vmatprep.subr.bf16.mxu0 0
        %1157 = vmatpush1.bf16.msra.mxu0 0
        %1158 = vmatprep.subr.bf16.mxu0 0
        %1159 = vmatpush1.bf16.msra.mxu0 0
        %1160 = vmatprep.subr.bf16.mxu0 0
        %1161 = vmatpush1.bf16.msra.mxu0 0
        %1162 = vmatprep.subr.bf16.mxu0 0
        %1163 = vmatpush1.bf16.msra.mxu0 0
        %1164 = vmatprep.subr.bf16.mxu0 0
        %1165 = vmatpush1.bf16.msra.mxu0 0
        %1166 = vmatprep.subr.bf16.mxu0 0
        %1167 = vmatpush1.bf16.msra.mxu0 0
        %1168 = vmatprep.subr.bf16.mxu0 0
        %1169 = vmatpush1.bf16.msra.mxu0 0
        %1170 = vmatprep.subr.bf16.mxu0 0
        %1171 = vmatpush1.bf16.msra.mxu0 0
        %1172 = vmatprep.subr.bf16.mxu0 0
        %1173 = vmatpush1.bf16.msra.mxu0 0
        %1174 = vmatprep.subr.bf16.mxu0 0
        %1175 = vmatpush1.bf16.msra.mxu0 0
        %1176 = vmatprep.mubr.bf16.mxu0 0
        %1177 = vmatmul.mubr.bf16.gmra.mrb[0].mxu0 %v1142
        %v1178 = vpop.f32.mrb[0].mxu0
        %v1179 = vadd.f32 0.0, %v1178
        %v1180 = vpop.f32.mrb[0].mxu0
        %v1181 = vpop.f32.mrb[0].mxu0
        %v1182 = vadd.f32 0.0, %v1181
        %v1183 = vpop.f32.mrb[0].mxu0
        %1184 = vdwg.mxu0
        %v1185 = vpack.c.bf16 %v1041, %v1038
        %v1186 = vpack.c.bf16 %v1088, %v1085
        %v1187 = vpack.c.bf16 %v1135, %v1132
        %v1188 = vpack.c.bf16 %v1182, %v1179
        %v1189 = vld [vmem:[%s394] sm:$0xf]
        %v1190 = vld [vmem:[%s394 + $0x4] sm:$0xf]
        %v1191 = vld [vmem:[%s394 + $0x8] sm:$0xf]
        %v1192 = vld [vmem:[%s394 + $0xc] sm:$0xf]
        %v1197 = vunpack.c.l.b16 %v1189
        %v1198 = vunpack.c.l.b16 %v1190
        %v1199 = vunpack.c.l.b16 %v1191
        %v1200 = vunpack.c.l.b16 %v1192
        %v1201 = vpack.c.b16 %v1198, %v1197
        %v1202 = vpack.c.b16 %v1200, %v1199
        %v1206 = vsel %vm706, %v1185, 0
        %v1209 = vsel %vm706, %v1186, 0
        %v1212 = vsel %vm706, %v1187, 0
        %v1215 = vsel %vm706, %v1188, 0
        %1217 = vmatprep.subr.bf16.mxu0 0
        %1218 = vmatpush1.bf16.msra.mxu0 %v1201
        %1219 = vmatprep.subr.bf16.mxu0 0
        %1220 = vmatpush1.bf16.msra.mxu0 %v1202
        %1221 = vmatprep.subr.bf16.mxu0 0
        %1222 = vmatpush1.bf16.msra.mxu0 0
        %1223 = vmatprep.subr.bf16.mxu0 0
        %1224 = vmatpush1.bf16.msra.mxu0 0
        %1225 = vmatprep.subr.bf16.mxu0 0
        %1226 = vmatpush1.bf16.msra.mxu0 0
        %1227 = vmatprep.subr.bf16.mxu0 0
        %1228 = vmatpush1.bf16.msra.mxu0 0
        %1229 = vmatprep.subr.bf16.mxu0 0
        %1230 = vmatpush1.bf16.msra.mxu0 0
        %1231 = vmatprep.subr.bf16.mxu0 0
        %1232 = vmatpush1.bf16.msra.mxu0 0
        %1233 = vmatprep.subr.bf16.mxu0 0
        %1234 = vmatpush1.bf16.msra.mxu0 0
        %1235 = vmatprep.subr.bf16.mxu0 0
        %1236 = vmatpush1.bf16.msra.mxu0 0
        %1237 = vmatprep.subr.bf16.mxu0 0
        %1238 = vmatpush1.bf16.msra.mxu0 0
        %1239 = vmatprep.subr.bf16.mxu0 0
        %1240 = vmatpush1.bf16.msra.mxu0 0
        %1241 = vmatprep.subr.bf16.mxu0 0
        %1242 = vmatpush1.bf16.msra.mxu0 0
        %1243 = vmatprep.subr.bf16.mxu0 0
        %1244 = vmatpush1.bf16.msra.mxu0 0
        %1245 = vmatprep.subr.bf16.mxu0 0
        %1246 = vmatpush1.bf16.msra.mxu0 0
        %1247 = vmatprep.subr.bf16.mxu0 0
        %1248 = vmatpush1.bf16.msra.mxu0 0
        %1249 = vmatprep.mubr.bf16.mxu0 0
        %1250 = vmatmul.mubr.bf16.gmra.mrb[0].mxu0 %v1206
        %v1251 = vpop.f32.mrb[0].mxu0
        %v1252 = vadd.f32 0.0, %v1251
        %v1253 = vpop.f32.mrb[0].mxu0
        %v1254 = vpop.f32.mrb[0].mxu0
        %v1255 = vadd.f32 0.0, %v1254
        %v1256 = vpop.f32.mrb[0].mxu0
        %1257 = vmatprep.mubr.bf16.mxu0 0
        %1258 = vmatmul.mubr.bf16.gmra.mrb[0].mxu0 %v1209
        %v1259 = vpop.f32.mrb[0].mxu0
        %v1260 = vadd.f32 0.0, %v1259
        %v1261 = vpop.f32.mrb[0].mxu0
        %v1262 = vpop.f32.mrb[0].mxu0
        %v1263 = vadd.f32 0.0, %v1262
        %v1264 = vpop.f32.mrb[0].mxu0
        %1265 = vmatprep.mubr.bf16.mxu0 0
        %1266 = vmatmul.mubr.bf16.gmra.mrb[0].mxu0 %v1212
        %v1267 = vpop.f32.mrb[0].mxu0
        %v1268 = vadd.f32 0.0, %v1267
        %v1269 = vpop.f32.mrb[0].mxu0
        %v1270 = vpop.f32.mrb[0].mxu0
        %v1271 = vadd.f32 0.0, %v1270
        %v1272 = vpop.f32.mrb[0].mxu0
        %1273 = vmatprep.mubr.bf16.mxu0 0
        %1274 = vmatmul.mubr.bf16.gmra.mrb[0].mxu0 %v1215
        %v1275 = vpop.f32.mrb[0].mxu0
        %v1276 = vadd.f32 0.0, %v1275
        %v1277 = vpop.f32.mrb[0].mxu0
        %v1278 = vpop.f32.mrb[0].mxu0
        %v1279 = vadd.f32 0.0, %v1278
        %v1280 = vpop.f32.mrb[0].mxu0
        %1281 = vdwg.mxu0
        %v1282 = vld [vmem:[%s369] sm:$0xff]
        %v1283 = vld [vmem:[%s369 + $0x8] sm:$0xff]
        %v1284 = vld [vmem:[%s369 + $0x10] sm:$0xff]
        %v1285 = vld [vmem:[%s369 + $0x18] sm:$0xff]
        %v1286 = vld [vmem:[%s369 + $0x20] sm:$0xff]
        %v1287 = vld [vmem:[%s369 + $0x28] sm:$0xff]
        %v1288 = vld [vmem:[%s369 + $0x30] sm:$0xff]
        %v1289 = vld [vmem:[%s369 + $0x38] sm:$0xff]
        %v1290 = vadd.f32 %v1282, %v1252
        %v1291 = vadd.f32 %v1283, %v1255
        %v1292 = vadd.f32 %v1284, %v1260
        %v1293 = vadd.f32 %v1285, %v1263
        %v1294 = vadd.f32 %v1286, %v1268
        %v1295 = vadd.f32 %v1287, %v1271
        %v1296 = vadd.f32 %v1288, %v1276
        %v1297 = vadd.f32 %v1289, %v1279
        %1298 = vst [vmem:[%s369] sm:$0xff] %v1290
        %1299 = vst [vmem:[%s369 + $0x8] sm:$0xff] %v1291
        %1300 = vst [vmem:[%s369 + $0x10] sm:$0xff] %v1292
        %1301 = vst [vmem:[%s369 + $0x18] sm:$0xff] %v1293
        %1302 = vst [vmem:[%s369 + $0x20] sm:$0xff] %v1294
        %1303 = vst [vmem:[%s369 + $0x28] sm:$0xff] %v1295
        %1304 = vst [vmem:[%s369 + $0x30] sm:$0xff] %v1296
        %1305 = vst [vmem:[%s369 + $0x38] sm:$0xff] %v1297
        %s1306 = sand.u32 %s235, 1
        %s1307 = scalar_lea.sflag [#allocation4], %s1306
        %s1308 = sand.u32 %s235, 1
        %s1309 = smul.addr %s1308, 64
        %s1310 = scalar_lea.vmem [#allocation3], %s1309
        // Predicated region
        $region57: #{tpu_custom_call.1} parent=51 // pred_check
          %p1311 = pneg %p245
        $region58: #{tpu_custom_call.1} parent=51 // pred_check_branch
          %1313 = sbr.rel (%p1311) target = $region60
        $region59: #{tpu_custom_call.1} parent=51 // pred_region
          %s1314 = smul.u32 8, %s26
          %s1316 = ssub.s32 1024, 1024
          %1317 = vsyncadd %s1307, %s1316
          %s1318 = smul.addr %s1314, 128
          %s1319 = scalar_lea.hbm %s8, %s1318
          %s1320 = sshll.u32 %s1310, 4
          %s1321 = int_to_ptr.vmem [resolvable:$true] %s1320
          %1326 = dma.vmem_to_hbm [thread:$0]  %s1321, 1024, %s1319, %s1307, 128, 128, 8
        $region60: #{tpu_custom_call.1} parent=51 // pred_fallthru
          _
      $region52: #{tpu_custom_call.1} parent=5 // pred_fallthru
        _
      %p1327 = scmp.le.s32.totalorder 2, %s17
      // Predicated region
      $region61: #{tpu_custom_call.1} parent=5 // pred_check
        %p1328 = pneg %p1327
      $region62: #{tpu_custom_call.1} parent=5 // pred_check_branch
        %1330 = sbr.rel (%p1328) target = $region64
      $region63: #{tpu_custom_call.1} parent=5 // pred_region
        %s1331 = ssub.s32 %s17, 2
        // Predicated region
        $region65: #{tpu_custom_call.1} parent=63 // pred_check
          %p1332 = pneg %p251
        $region66: #{tpu_custom_call.1} parent=63 // pred_check_branch
          %1334 = sbr.rel (%p1332) target = $region68
        $region67: #{tpu_custom_call.1} parent=63 // pred_region
          %s1335 = sand.u32 %s236, 1
          %s1336 = scalar_lea.sflag [#allocation4], %s1335
          %s1337 = sand.u32 %s236, 1
          %s1338 = smul.addr %s1337, 64
          %s1339 = scalar_lea.vmem [#allocation3], %s1338
          %1340 = dma.done %s1336, 1024
        $region68: #{tpu_custom_call.1} parent=63 // pred_fallthru
          _
      $region64: #{tpu_custom_call.1} parent=5 // pred_fallthru
        _
    $region6: #{tpu_custom_call.1} parent=1 // loop_footer
      %s21 = sadd.s32 1, %s17
    $region7: #{tpu_custom_call.1} parent=1 // loop_footer_branch
      %16 = sbr.rel target = $region3
    $region8: #{tpu_custom_call.1} parent=1 // loop_exit
      _
    %1341 = vsyncpa [#allocation4], 1
    %s1342 = scalar_lea.sflag [#allocation4], 1
    %1343 = vsyncpa %s1342, 1

</llo_original>
